<compile_context>
chip_gen: v6e
topology: v6e:2x2x1
jax: 0.10.0
libtpu: 0.0.40
codegen_flags: <defaults>
</compile_context>

<pallas_src>
import functools

import jax
import jax.numpy as jnp
from jax.experimental import pallas as pl
from jax.experimental.pallas import tpu as pltpu

# ---------------------------------------------------------------------------
# Model sizes (from the PyTorch module) and lane-padded sizes.
# ---------------------------------------------------------------------------
IN_F = 28 * 28          # 784
HID = 400
CLASSES = 10

IN_P = 896              # 784 -> 7 * 128
HID_P = 512             # 400 -> 4 * 128
CLS_P = 128             # 10  -> 128

NEG_BIG = -1e30         # masks padded class logits out of log_softmax

MAX_BT = 256            # batch-tile cap: keeps double-buffered tiles small in
                        # VMEM and gives >=2 grid steps (v7x megacore) for
                        # batches > 256.


def _pad_to(x, shape):
    pads = [(0, s - d) for d, s in zip(x.shape, shape)]
    return jnp.pad(x, pads)


def _choose_bt(b):
    # >= 16 so bf16 operands stay sublane-aligned, capped at MAX_BT.
    return min(MAX_BT, max(16, pl.next_power_of_2(b)))


# ---------------------------------------------------------------------------
# Pallas kernel: fused 3-layer MLP + ReLU + log_softmax
# Matmul operands are bf16 (MXU-native); accumulation, bias adds and the
# softmax are f32.
# ---------------------------------------------------------------------------
def _mlp_kernel(x_ref, w1_ref, b1_ref, w2_ref, b2_ref, w3_ref, b3_ref, o_ref):
    x = x_ref[...]                                                  # bf16

    h1 = jnp.dot(x, w1_ref[...], preferred_element_type=jnp.float32)
    h1 = jnp.maximum(h1 + b1_ref[...], 0.0)                         # f32

    h2 = jnp.dot(h1.astype(jnp.bfloat16), w2_ref[...],
                 preferred_element_type=jnp.float32)
    h2 = jnp.maximum(h2 + b2_ref[...], 0.0)                         # f32

    logits = jnp.dot(h2.astype(jnp.bfloat16), w3_ref[...],
                     preferred_element_type=jnp.float32)
    logits = logits + b3_ref[...]   # f32 bias; padded classes carry -1e30

    # log_softmax over the class axis (padded classes vanish from the
    # logsumexp and are sliced away by the wrapper).  The lane-reduce and exp
    # land on XLU/EUP slots, effectively free once the kernel is MXU-bound.
    m = jnp.max(logits, axis=-1, keepdims=True)
    lse = jnp.log(jnp.sum(jnp.exp(logits - m), axis=-1, keepdims=True)) + m
    o_ref[...] = logits - lse


def _mlp_pallas(x_p, w1, b1, w2, b2, w3, b3, *, bt):
    bp = x_p.shape[0]
    grid = (bp // bt,)
    return pl.pallas_call(
        _mlp_kernel,
        out_shape=jax.ShapeDtypeStruct((bp, CLS_P), jnp.float32),
        grid_spec=pltpu.PrefetchScalarGridSpec(
            num_scalar_prefetch=0,
            grid=grid,
            in_specs=[
                pl.BlockSpec((bt, IN_P), lambda i: (i, 0)),
                pl.BlockSpec((IN_P, HID_P), lambda i: (0, 0)),
                pl.BlockSpec((1, HID_P), lambda i: (0, 0)),
                pl.BlockSpec((HID_P, HID_P), lambda i: (0, 0)),
                pl.BlockSpec((1, HID_P), lambda i: (0, 0)),
                pl.BlockSpec((HID_P, CLS_P), lambda i: (0, 0)),
                pl.BlockSpec((1, CLS_P), lambda i: (0, 0)),
            ],
            out_specs=pl.BlockSpec((bt, CLS_P), lambda i: (i, 0)),
        ),
        compiler_params=pltpu.CompilerParams(
            dimension_semantics=("parallel",)),
    )(x_p, w1, b1, w2, b2, w3, b3)


# ---------------------------------------------------------------------------
# Parameter construction (deterministic, mirrors BayesianLinear.__init__).
# Weights are (in, out) = torch (out, in).T ; biases are (out,).
# ---------------------------------------------------------------------------
def init_params(key):
    def layer(key, fan_in, fan_out):
        k1, k2, k3, k4 = jax.random.split(key, 4)
        w_mu = jax.random.uniform(k1, (fan_in, fan_out), jnp.float32, -0.2, 0.2)
        w_rho = jax.random.uniform(k2, (fan_in, fan_out), jnp.float32, -5.0, -4.0)
        b_mu = jax.random.uniform(k3, (fan_out,), jnp.float32, -0.2, 0.2)
        b_rho = jax.random.uniform(k4, (fan_out,), jnp.float32, -5.0, -4.0)
        return dict(w_mu=w_mu, w_rho=w_rho, b_mu=b_mu, b_rho=b_rho)

    k1, k2, k3 = jax.random.split(key, 3)
    return dict(l1=layer(k1, IN_F, HID),
                l2=layer(k2, HID, HID),
                l3=layer(k3, HID, CLASSES))


def _realize_layer(p, sample, key):
    """weight = mu (+ softplus(rho) * eps if sample) -- Gaussian.sample()."""
    # TODO(synk): for sample=True hot loops, the softplus(rho)*eps realisation
    # could be moved in-kernel with pltpu.prng_seed/prng_random_bits to avoid
    # materialising full-size weight temporaries in HBM per MC sample.
    if sample:
        kw, kb = jax.random.split(key)
        w_sig = jnp.log1p(jnp.exp(p["w_rho"]))
        b_sig = jnp.log1p(jnp.exp(p["b_rho"]))
        w = p["w_mu"] + w_sig * jax.random.normal(kw, p["w_mu"].shape)
        b = p["b_mu"] + b_sig * jax.random.normal(kb, p["b_mu"].shape)
    else:
        w, b = p["w_mu"], p["b_mu"]
    return w, b


# ---------------------------------------------------------------------------
# BayesianNetwork.forward wrapper
# ---------------------------------------------------------------------------
def bayesian_network_forward(params, x_nchw, sample=False, key=None):
    """x_nchw: (B, 1, 28, 28) float32.  Returns (B, 10) log-probabilities."""
    b = x_nchw.shape[0]
    x = x_nchw.reshape(b, IN_F).astype(jnp.float32)   # == x.view(-1, 784)

    if sample:
        keys = jax.random.split(key, 3)
    else:
        keys = [None, None, None]
    w1, b1 = _realize_layer(params["l1"], sample, keys[0])
    w2, b2 = _realize_layer(params["l2"], sample, keys[1])
    w3, b3 = _realize_layer(params["l3"], sample, keys[2])

    # Zero-pad to lane-friendly tile sizes.  Matmul operands go to bf16; the
    # padded class logits get a -1e30 bias (added in f32 inside the kernel)
    # so they vanish from the in-kernel log_softmax.
    bt = _choose_bt(b)
    bp = ((b + bt - 1) // bt) * bt
    x_p = _pad_to(x, (bp, IN_P)).astype(jnp.bfloat16)
    w1_p = _pad_to(w1, (IN_P, HID_P)).astype(jnp.bfloat16)
    b1_p = _pad_to(b1.reshape(1, -1), (1, HID_P))
    w2_p = _pad_to(w2, (HID_P, HID_P)).astype(jnp.bfloat16)
    b2_p = _pad_to(b2.reshape(1, -1), (1, HID_P))
    w3_p = _pad_to(w3, (HID_P, CLS_P)).astype(jnp.bfloat16)
    b3_p = jnp.full((1, CLS_P), NEG_BIG, jnp.float32).at[0, :CLASSES].set(b3)

    out_p = _mlp_pallas(x_p, w1_p, b1_p, w2_p, b2_p, w3_p, b3_p, bt=bt)
    return out_p[:b, :CLASSES]


# ---------------------------------------------------------------------------
if __name__ == "__main__":
    key = jax.random.PRNGKey(0)
    pkey, xkey, skey = jax.random.split(key, 3)

    params = init_params(pkey)

    # small batch of MNIST-shaped inputs (NCHW), values in [0, 1)
    batch = 8
    x = jax.random.uniform(xkey, (batch, 1, 28, 28), jnp.float32)

    # eval path (sample=False): deterministic weights = mu
    fwd = jax.jit(functools.partial(bayesian_network_forward, sample=False))
    out = jax.block_until_ready(fwd(params, x))
    assert out.shape == (batch, CLASSES)
    assert bool(jnp.all(jnp.isfinite(out)))
    row_sums = jnp.sum(jnp.exp(out), axis=1)
    assert bool(jnp.all(jnp.abs(row_sums - 1.0) < 1e-3))

    # sampled path (sample=True): weight = mu + softplus(rho) * eps
    fwd_s = jax.jit(functools.partial(bayesian_network_forward, sample=True))
    out_s = jax.block_until_ready(fwd_s(params, x, key=skey))
    assert out_s.shape == (batch, CLASSES)
    assert bool(jnp.all(jnp.isfinite(out_s)))
    row_sums_s = jnp.sum(jnp.exp(out_s), axis=1)
    assert bool(jnp.all(jnp.abs(row_sums_s - 1.0) < 1e-3))

    print("KERNEL_OK")
</pallas_src>

<mosaic_0001>
module attributes {stable_mosaic.version = 11 : i64} {
  func.func @_mlp_kernel(%arg0: i32, %arg1: memref<16x896xbf16, #tpu.memory_space<vmem>>, %arg2: memref<896x512xbf16, #tpu.memory_space<vmem>>, %arg3: memref<1x512xf32, #tpu.memory_space<vmem>>, %arg4: memref<512x512xbf16, #tpu.memory_space<vmem>>, %arg5: memref<1x512xf32, #tpu.memory_space<vmem>>, %arg6: memref<512x128xbf16, #tpu.memory_space<vmem>>, %arg7: memref<1x128xf32, #tpu.memory_space<vmem>>, %arg8: memref<16x128xf32, #tpu.memory_space<vmem>>) attributes {dimension_semantics = [#tpu.dimension_semantics<parallel>], iteration_bounds = array<i64: 1>, scalar_prefetch = 0 : i64, scratch_operands = 0 : i64, tpu.core_type = #tpu.core_type<tc>, window_params = [{transform_indices = @transform_0, window_bounds = array<i64: 16, 896>}, {pipeline_mode = #tpu.pipeline_mode<synchronous>, transform_indices = @transform_1, window_bounds = array<i64: 896, 512>}, {pipeline_mode = #tpu.pipeline_mode<synchronous>, transform_indices = @transform_2, window_bounds = array<i64: 1, 512>}, {pipeline_mode = #tpu.pipeline_mode<synchronous>, transform_indices = @transform_3, window_bounds = array<i64: 512, 512>}, {pipeline_mode = #tpu.pipeline_mode<synchronous>, transform_indices = @transform_4, window_bounds = array<i64: 1, 512>}, {pipeline_mode = #tpu.pipeline_mode<synchronous>, transform_indices = @transform_5, window_bounds = array<i64: 512, 128>}, {pipeline_mode = #tpu.pipeline_mode<synchronous>, transform_indices = @transform_6, window_bounds = array<i64: 1, 128>}, {transform_indices = @transform_7, window_bounds = array<i64: 16, 128>}]} {
    %c0 = arith.constant 0 : index
    %c0_0 = arith.constant 0 : index
    %0 = vector.load %arg1[%c0, %c0_0] : memref<16x896xbf16, #tpu.memory_space<vmem>>, vector<16x896xbf16>
    %c0_1 = arith.constant 0 : index
    %c0_2 = arith.constant 0 : index
    %1 = vector.load %arg2[%c0_1, %c0_2] : memref<896x512xbf16, #tpu.memory_space<vmem>>, vector<896x512xbf16>
    %cst = arith.constant dense<0.000000e+00> : vector<16x512xf32>
    %2 = tpu.matmul %0, %1, %cst {dimension_numbers = #tpu.dot_dimension_numbers<[1], [0], [0], [1], [0, 0, 1, 1], [], []>} : vector<16x896xbf16>, vector<896x512xbf16>, vector<16x512xf32> -> vector<16x512xf32>
    %c0_3 = arith.constant 0 : index
    %c0_4 = arith.constant 0 : index
    %3 = vector.load %arg3[%c0_3, %c0_4] : memref<1x512xf32, #tpu.memory_space<vmem>>, vector<1x512xf32>
    %4 = vector.broadcast %3 : vector<1x512xf32> to vector<16x512xf32>
    %5 = arith.addf %2, %4 : vector<16x512xf32>
    %cst_5 = arith.constant 0.000000e+00 : f32
    %6 = vector.broadcast %cst_5 : f32 to vector<16x512xf32>
    %7 = arith.maximumf %5, %6 : vector<16x512xf32>
    %8 = arith.truncf %7 : vector<16x512xf32> to vector<16x512xbf16>
    %c0_6 = arith.constant 0 : index
    %c0_7 = arith.constant 0 : index
    %9 = vector.load %arg4[%c0_6, %c0_7] : memref<512x512xbf16, #tpu.memory_space<vmem>>, vector<512x512xbf16>
    %cst_8 = arith.constant dense<0.000000e+00> : vector<16x512xf32>
    %10 = tpu.matmul %8, %9, %cst_8 {dimension_numbers = #tpu.dot_dimension_numbers<[1], [0], [0], [1], [0, 0, 1, 1], [], []>} : vector<16x512xbf16>, vector<512x512xbf16>, vector<16x512xf32> -> vector<16x512xf32>
    %c0_9 = arith.constant 0 : index
    %c0_10 = arith.constant 0 : index
    %11 = vector.load %arg5[%c0_9, %c0_10] : memref<1x512xf32, #tpu.memory_space<vmem>>, vector<1x512xf32>
    %12 = vector.broadcast %11 : vector<1x512xf32> to vector<16x512xf32>
    %13 = arith.addf %10, %12 : vector<16x512xf32>
    %cst_11 = arith.constant 0.000000e+00 : f32
    %14 = vector.broadcast %cst_11 : f32 to vector<16x512xf32>
    %15 = arith.maximumf %13, %14 : vector<16x512xf32>
    %16 = arith.truncf %15 : vector<16x512xf32> to vector<16x512xbf16>
    %c0_12 = arith.constant 0 : index
    %c0_13 = arith.constant 0 : index
    %17 = vector.load %arg6[%c0_12, %c0_13] : memref<512x128xbf16, #tpu.memory_space<vmem>>, vector<512x128xbf16>
    %cst_14 = arith.constant dense<0.000000e+00> : vector<16x128xf32>
    %18 = tpu.matmul %16, %17, %cst_14 {dimension_numbers = #tpu.dot_dimension_numbers<[1], [0], [0], [1], [0, 0, 1, 1], [], []>} : vector<16x512xbf16>, vector<512x128xbf16>, vector<16x128xf32> -> vector<16x128xf32>
    %c0_15 = arith.constant 0 : index
    %c0_16 = arith.constant 0 : index
    %19 = vector.load %arg7[%c0_15, %c0_16] : memref<1x128xf32, #tpu.memory_space<vmem>>, vector<1x128xf32>
    %20 = vector.broadcast %19 : vector<1x128xf32> to vector<16x128xf32>
    %21 = arith.addf %18, %20 : vector<16x128xf32>
    %cst_17 = arith.constant dense<0xFF800000> : vector<16xf32>
    %22 = vector.multi_reduction <maximumf>, %21, %cst_17 [1] : vector<16x128xf32> to vector<16xf32>
    %23 = vector.shape_cast %22 : vector<16xf32> to vector<16x1xf32>
    %24 = vector.broadcast %23 : vector<16x1xf32> to vector<16x128xf32>
    %25 = arith.subf %21, %24 : vector<16x128xf32>
    %26 = math.exp %25 : vector<16x128xf32>
    %cst_18 = arith.constant dense<0.000000e+00> : vector<16xf32>
    %27 = vector.multi_reduction <add>, %26, %cst_18 [1] : vector<16x128xf32> to vector<16xf32>
    %28 = vector.shape_cast %27 : vector<16xf32> to vector<16x1xf32>
    %29 = math.log %28 : vector<16x1xf32>
    %30 = arith.addf %29, %23 : vector<16x1xf32>
    %31 = vector.broadcast %30 : vector<16x1xf32> to vector<16x128xf32>
    %32 = arith.subf %21, %31 : vector<16x128xf32>
    %c0_19 = arith.constant 0 : index
    %c0_20 = arith.constant 0 : index
    %33 = vector.load %arg8[%c0_19, %c0_20] : memref<16x128xf32, #tpu.memory_space<vmem>>, vector<16x128xf32>
    tpu.vector_store %arg8[%c0_19, %c0_20], %32 {strides = array<i32>} : memref<16x128xf32, #tpu.memory_space<vmem>>, vector<16x128xf32>,
    return
  }
  func.func @transform_0(%arg0: i32) -> (i32, i32) {
    %c0_i32 = arith.constant 0 : i32
    %c0_i32_0 = arith.constant 0 : i32
    return %arg0, %c0_i32 : i32, i32
  }
  func.func @transform_1(%arg0: i32) -> (i32, i32) {
    %c0_i32 = arith.constant 0 : i32
    %c0_i32_0 = arith.constant 0 : i32
    %c0_i32_1 = arith.constant 0 : i32
    return %c0_i32, %c0_i32_0 : i32, i32
  }
  func.func @transform_2(%arg0: i32) -> (i32, i32) {
    %c0_i32 = arith.constant 0 : i32
    %c0_i32_0 = arith.constant 0 : i32
    %c0_i32_1 = arith.constant 0 : i32
    return %c0_i32, %c0_i32_0 : i32, i32
  }
  func.func @transform_3(%arg0: i32) -> (i32, i32) {
    %c0_i32 = arith.constant 0 : i32
    %c0_i32_0 = arith.constant 0 : i32
    %c0_i32_1 = arith.constant 0 : i32
    return %c0_i32, %c0_i32_0 : i32, i32
  }
  func.func @transform_4(%arg0: i32) -> (i32, i32) {
    %c0_i32 = arith.constant 0 : i32
    %c0_i32_0 = arith.constant 0 : i32
    %c0_i32_1 = arith.constant 0 : i32
    return %c0_i32, %c0_i32_0 : i32, i32
  }
  func.func @transform_5(%arg0: i32) -> (i32, i32) {
    %c0_i32 = arith.constant 0 : i32
    %c0_i32_0 = arith.constant 0 : i32
    %c0_i32_1 = arith.constant 0 : i32
    return %c0_i32, %c0_i32_0 : i32, i32
  }
  func.func @transform_6(%arg0: i32) -> (i32, i32) {
    %c0_i32 = arith.constant 0 : i32
    %c0_i32_0 = arith.constant 0 : i32
    %c0_i32_1 = arith.constant 0 : i32
    return %c0_i32, %c0_i32_0 : i32, i32
  }
  func.func @transform_7(%arg0: i32) -> (i32, i32) {
    %c0_i32 = arith.constant 0 : i32
    %c0_i32_0 = arith.constant 0 : i32
    return %arg0, %c0_i32 : i32, i32
  }
}

</mosaic_0001>

<llo_original>
// kernel: bayesian_network_forward.1
$region0: #{bayesian_network_forward.1}
  #allocation0 [shape = 'u32[]', space=smem, size = 0x4, offset = 0x4, fixed_abs, tag = 'smem constant byte address 0x4 - core index']
  #allocation1 [shape = 'u32[144,128]{1,0:T(1,128)}', space=vmem, size = 0x12000, scoped, tag = 'internal scratch']
  %s0 = inlined_call_operand.vmem [shape: bf16[16,896], index: 0, kind: input, shape index: {}]
  %s1 = inlined_call_operand.vmem [shape: bf16[896,512], index: 1, kind: input, shape index: {}]
  %s2 = inlined_call_operand.vmem [shape: f32[1,512], index: 2, kind: input, shape index: {}]
  %s3 = inlined_call_operand.vmem [shape: bf16[512,512], index: 3, kind: input, shape index: {}]
  %s4 = inlined_call_operand.vmem [shape: f32[1,512], index: 4, kind: input, shape index: {}]
  %s5 = inlined_call_operand.vmem [shape: bf16[512,128], index: 5, kind: input, shape index: {}]
  %s6 = inlined_call_operand.vmem [shape: f32[1,128], index: 6, kind: input, shape index: {}]
  %s7 = inlined_call_operand.vmem [shape: f32[16,128], index: 7, kind: output, shape index: {}]
  %s8 = sld [smem:[#allocation0]]
  $region38: #{bayesian_network_forward.1} parent=0
    _
  %s10 = ssub.s32 1, %s8
  %s11 = scalar_select 0, %s10, %s8
  // Predicated region
  $region2: #{bayesian_network_forward.1} parent=0 // pred_check
    _
  $region3: #{bayesian_network_forward.1} parent=0 // pred_check_branch
    %13 = sbr.rel (0) target = $region5
  $region4: #{bayesian_network_forward.1} parent=0 // pred_region
    _
  $region5: #{bayesian_network_forward.1} parent=0 // pred_fallthru
    _
  // Predicated region
  $region6: #{bayesian_network_forward.1} parent=0 // pred_check
    _
  $region7: #{bayesian_network_forward.1} parent=0 // pred_check_branch
    %15 = sbr.rel (0) target = $region9
  $region8: #{bayesian_network_forward.1} parent=0 // pred_region
    _
  $region9: #{bayesian_network_forward.1} parent=0 // pred_fallthru
    _
  // Predicated region
  $region10: #{bayesian_network_forward.1} parent=0 // pred_check
    _
  $region11: #{bayesian_network_forward.1} parent=0 // pred_check_branch
    %17 = sbr.rel (0) target = $region13
  $region12: #{bayesian_network_forward.1} parent=0 // pred_region
    _
  $region13: #{bayesian_network_forward.1} parent=0 // pred_fallthru
    _
  // Predicated region
  $region14: #{bayesian_network_forward.1} parent=0 // pred_check
    _
  $region15: #{bayesian_network_forward.1} parent=0 // pred_check_branch
    %19 = sbr.rel (0) target = $region17
  $region16: #{bayesian_network_forward.1} parent=0 // pred_region
    _
  $region17: #{bayesian_network_forward.1} parent=0 // pred_fallthru
    _
  // Predicated region
  $region18: #{bayesian_network_forward.1} parent=0 // pred_check
    _
  $region19: #{bayesian_network_forward.1} parent=0 // pred_check_branch
    %21 = sbr.rel (0) target = $region21
  $region20: #{bayesian_network_forward.1} parent=0 // pred_region
    _
  $region21: #{bayesian_network_forward.1} parent=0 // pred_fallthru
    _
  // Predicated region
  $region22: #{bayesian_network_forward.1} parent=0 // pred_check
    _
  $region23: #{bayesian_network_forward.1} parent=0 // pred_check_branch
    %23 = sbr.rel (0) target = $region25
  $region24: #{bayesian_network_forward.1} parent=0 // pred_region
    _
  $region25: #{bayesian_network_forward.1} parent=0 // pred_fallthru
    _
  // Predicated region
  $region26: #{bayesian_network_forward.1} parent=0 // pred_check
    _
  $region27: #{bayesian_network_forward.1} parent=0 // pred_check_branch
    %25 = sbr.rel (0) target = $region29
  $region28: #{bayesian_network_forward.1} parent=0 // pred_region
    _
  $region29: #{bayesian_network_forward.1} parent=0 // pred_fallthru
    _
  %v27 = vld [vmem:[%s0] sm:$0xff]
  %v28 = vld [vmem:[%s0 + $0x8] sm:$0xff]
  %v29 = vld [vmem:[%s0 + $0x10] sm:$0xff]
  %v30 = vld [vmem:[%s0 + $0x18] sm:$0xf]
  %v31 = vld [vmem:[%s0 + $0x1c] sm:$0xff]
  %v32 = vld [vmem:[%s0 + $0x24] sm:$0xff]
  %v33 = vld [vmem:[%s0 + $0x2c] sm:$0xff]
  %v34 = vld [vmem:[%s0 + $0x34] sm:$0xf]
  %v35 = vld [vmem:[%s1] sm:$0xff]
  %v36 = vld [vmem:[%s1 + $0x8] sm:$0xff]
  %v37 = vld [vmem:[%s1 + $0x10] sm:$0xff]
  %v38 = vld [vmem:[%s1 + $0x18] sm:$0xff]
  %v39 = vld [vmem:[%s1 + $0x20] sm:$0xff]
  %v40 = vld [vmem:[%s1 + $0x28] sm:$0xff]
  %v41 = vld [vmem:[%s1 + $0x30] sm:$0xff]
  %v42 = vld [vmem:[%s1 + $0x38] sm:$0xff]
  %v43 = vld [vmem:[%s1 + $0x40] sm:$0xff]
  %v44 = vld [vmem:[%s1 + $0x48] sm:$0xff]
  %v45 = vld [vmem:[%s1 + $0x50] sm:$0xff]
  %v46 = vld [vmem:[%s1 + $0x58] sm:$0xff]
  %v47 = vld [vmem:[%s1 + $0x60] sm:$0xff]
  %v48 = vld [vmem:[%s1 + $0x68] sm:$0xff]
  %v49 = vld [vmem:[%s1 + $0x70] sm:$0xff]
  %v50 = vld [vmem:[%s1 + $0x78] sm:$0xff]
  %v51 = vld [vmem:[%s1 + $0x80] sm:$0xff]
  %v52 = vld [vmem:[%s1 + $0x88] sm:$0xff]
  %v53 = vld [vmem:[%s1 + $0x90] sm:$0xff]
  %v54 = vld [vmem:[%s1 + $0x98] sm:$0xff]
  %v55 = vld [vmem:[%s1 + $0xa0] sm:$0xff]
  %v56 = vld [vmem:[%s1 + $0xa8] sm:$0xff]
  %v57 = vld [vmem:[%s1 + $0xb0] sm:$0xff]
  %v58 = vld [vmem:[%s1 + $0xb8] sm:$0xff]
  %v59 = vld [vmem:[%s1 + $0xc0] sm:$0xff]
  %v60 = vld [vmem:[%s1 + $0xc8] sm:$0xff]
  %v61 = vld [vmem:[%s1 + $0xd0] sm:$0xff]
  %v62 = vld [vmem:[%s1 + $0xd8] sm:$0xff]
  %v63 = vld [vmem:[%s1 + $0xe0] sm:$0xff]
  %v64 = vld [vmem:[%s1 + $0xe8] sm:$0xff]
  %v65 = vld [vmem:[%s1 + $0xf0] sm:$0xff]
  %v66 = vld [vmem:[%s1 + $0xf8] sm:$0xff]
  %v67 = vld [vmem:[%s1 + $0x100] sm:$0xff]
  %v68 = vld [vmem:[%s1 + $0x108] sm:$0xff]
  %v69 = vld [vmem:[%s1 + $0x110] sm:$0xff]
  %v70 = vld [vmem:[%s1 + $0x118] sm:$0xff]
  %v71 = vld [vmem:[%s1 + $0x120] sm:$0xff]
  %v72 = vld [vmem:[%s1 + $0x128] sm:$0xff]
  %v73 = vld [vmem:[%s1 + $0x130] sm:$0xff]
  %v74 = vld [vmem:[%s1 + $0x138] sm:$0xff]
  %v75 = vld [vmem:[%s1 + $0x140] sm:$0xff]
  %v76 = vld [vmem:[%s1 + $0x148] sm:$0xff]
  %v77 = vld [vmem:[%s1 + $0x150] sm:$0xff]
  %v78 = vld [vmem:[%s1 + $0x158] sm:$0xff]
  %v79 = vld [vmem:[%s1 + $0x160] sm:$0xff]
  %v80 = vld [vmem:[%s1 + $0x168] sm:$0xff]
  %v81 = vld [vmem:[%s1 + $0x170] sm:$0xff]
  %v82 = vld [vmem:[%s1 + $0x178] sm:$0xff]
  %v83 = vld [vmem:[%s1 + $0x180] sm:$0xff]
  %v84 = vld [vmem:[%s1 + $0x188] sm:$0xff]
  %v85 = vld [vmem:[%s1 + $0x190] sm:$0xff]
  %v86 = vld [vmem:[%s1 + $0x198] sm:$0xff]
  %v87 = vld [vmem:[%s1 + $0x1a0] sm:$0xff]
  %v88 = vld [vmem:[%s1 + $0x1a8] sm:$0xff]
  %v89 = vld [vmem:[%s1 + $0x1b0] sm:$0xff]
  %v90 = vld [vmem:[%s1 + $0x1b8] sm:$0xff]
  %v91 = vld [vmem:[%s1 + $0x1c0] sm:$0xff]
  %v92 = vld [vmem:[%s1 + $0x1c8] sm:$0xff]
  %v93 = vld [vmem:[%s1 + $0x1d0] sm:$0xff]
  %v94 = vld [vmem:[%s1 + $0x1d8] sm:$0xff]
  %v95 = vld [vmem:[%s1 + $0x1e0] sm:$0xff]
  %v96 = vld [vmem:[%s1 + $0x1e8] sm:$0xff]
  %v97 = vld [vmem:[%s1 + $0x1f0] sm:$0xff]
  %v98 = vld [vmem:[%s1 + $0x1f8] sm:$0xff]
  %v99 = vld [vmem:[%s1 + $0x200] sm:$0xff]
  %v100 = vld [vmem:[%s1 + $0x208] sm:$0xff]
  %v101 = vld [vmem:[%s1 + $0x210] sm:$0xff]
  %v102 = vld [vmem:[%s1 + $0x218] sm:$0xff]
  %v103 = vld [vmem:[%s1 + $0x220] sm:$0xff]
  %v104 = vld [vmem:[%s1 + $0x228] sm:$0xff]
  %v105 = vld [vmem:[%s1 + $0x230] sm:$0xff]
  %v106 = vld [vmem:[%s1 + $0x238] sm:$0xff]
  %v107 = vld [vmem:[%s1 + $0x240] sm:$0xff]
  %v108 = vld [vmem:[%s1 + $0x248] sm:$0xff]
  %v109 = vld [vmem:[%s1 + $0x250] sm:$0xff]
  %v110 = vld [vmem:[%s1 + $0x258] sm:$0xff]
  %v111 = vld [vmem:[%s1 + $0x260] sm:$0xff]
  %v112 = vld [vmem:[%s1 + $0x268] sm:$0xff]
  %v113 = vld [vmem:[%s1 + $0x270] sm:$0xff]
  %v114 = vld [vmem:[%s1 + $0x278] sm:$0xff]
  %v115 = vld [vmem:[%s1 + $0x280] sm:$0xff]
  %v116 = vld [vmem:[%s1 + $0x288] sm:$0xff]
  %v117 = vld [vmem:[%s1 + $0x290] sm:$0xff]
  %v118 = vld [vmem:[%s1 + $0x298] sm:$0xff]
  %v119 = vld [vmem:[%s1 + $0x2a0] sm:$0xff]
  %v120 = vld [vmem:[%s1 + $0x2a8] sm:$0xff]
  %v121 = vld [vmem:[%s1 + $0x2b0] sm:$0xff]
  %v122 = vld [vmem:[%s1 + $0x2b8] sm:$0xff]
  %v123 = vld [vmem:[%s1 + $0x2c0] sm:$0xff]
  %v124 = vld [vmem:[%s1 + $0x2c8] sm:$0xff]
  %v125 = vld [vmem:[%s1 + $0x2d0] sm:$0xff]
  %v126 = vld [vmem:[%s1 + $0x2d8] sm:$0xff]
  %v127 = vld [vmem:[%s1 + $0x2e0] sm:$0xff]
  %v128 = vld [vmem:[%s1 + $0x2e8] sm:$0xff]
  %v129 = vld [vmem:[%s1 + $0x2f0] sm:$0xff]
  %v130 = vld [vmem:[%s1 + $0x2f8] sm:$0xff]
  %v131 = vld [vmem:[%s1 + $0x300] sm:$0xff]
  %v132 = vld [vmem:[%s1 + $0x308] sm:$0xff]
  %v133 = vld [vmem:[%s1 + $0x310] sm:$0xff]
  %v134 = vld [vmem:[%s1 + $0x318] sm:$0xff]
  %v135 = vld [vmem:[%s1 + $0x320] sm:$0xff]
  %v136 = vld [vmem:[%s1 + $0x328] sm:$0xff]
  %v137 = vld [vmem:[%s1 + $0x330] sm:$0xff]
  %v138 = vld [vmem:[%s1 + $0x338] sm:$0xff]
  %v139 = vld [vmem:[%s1 + $0x340] sm:$0xff]
  %v140 = vld [vmem:[%s1 + $0x348] sm:$0xff]
  %v141 = vld [vmem:[%s1 + $0x350] sm:$0xff]
  %v142 = vld [vmem:[%s1 + $0x358] sm:$0xff]
  %v143 = vld [vmem:[%s1 + $0x360] sm:$0xff]
  %v144 = vld [vmem:[%s1 + $0x368] sm:$0xff]
  %v145 = vld [vmem:[%s1 + $0x370] sm:$0xff]
  %v146 = vld [vmem:[%s1 + $0x378] sm:$0xff]
  %v147 = vld [vmem:[%s1 + $0x380] sm:$0xff]
  %v148 = vld [vmem:[%s1 + $0x388] sm:$0xff]
  %v149 = vld [vmem:[%s1 + $0x390] sm:$0xff]
  %v150 = vld [vmem:[%s1 + $0x398] sm:$0xff]
  %v151 = vld [vmem:[%s1 + $0x3a0] sm:$0xff]
  %v152 = vld [vmem:[%s1 + $0x3a8] sm:$0xff]
  %v153 = vld [vmem:[%s1 + $0x3b0] sm:$0xff]
  %v154 = vld [vmem:[%s1 + $0x3b8] sm:$0xff]
  %v155 = vld [vmem:[%s1 + $0x3c0] sm:$0xff]
  %v156 = vld [vmem:[%s1 + $0x3c8] sm:$0xff]
  %v157 = vld [vmem:[%s1 + $0x3d0] sm:$0xff]
  %v158 = vld [vmem:[%s1 + $0x3d8] sm:$0xff]
  %v159 = vld [vmem:[%s1 + $0x3e0] sm:$0xff]
  %v160 = vld [vmem:[%s1 + $0x3e8] sm:$0xff]
  %v161 = vld [vmem:[%s1 + $0x3f0] sm:$0xff]
  %v162 = vld [vmem:[%s1 + $0x3f8] sm:$0xff]
  %v163 = vld [vmem:[%s1 + $0x400] sm:$0xff]
  %v164 = vld [vmem:[%s1 + $0x408] sm:$0xff]
  %v165 = vld [vmem:[%s1 + $0x410] sm:$0xff]
  %v166 = vld [vmem:[%s1 + $0x418] sm:$0xff]
  %v167 = vld [vmem:[%s1 + $0x420] sm:$0xff]
  %v168 = vld [vmem:[%s1 + $0x428] sm:$0xff]
  %v169 = vld [vmem:[%s1 + $0x430] sm:$0xff]
  %v170 = vld [vmem:[%s1 + $0x438] sm:$0xff]
  %v171 = vld [vmem:[%s1 + $0x440] sm:$0xff]
  %v172 = vld [vmem:[%s1 + $0x448] sm:$0xff]
  %v173 = vld [vmem:[%s1 + $0x450] sm:$0xff]
  %v174 = vld [vmem:[%s1 + $0x458] sm:$0xff]
  %v175 = vld [vmem:[%s1 + $0x460] sm:$0xff]
  %v176 = vld [vmem:[%s1 + $0x468] sm:$0xff]
  %v177 = vld [vmem:[%s1 + $0x470] sm:$0xff]
  %v178 = vld [vmem:[%s1 + $0x478] sm:$0xff]
  %v179 = vld [vmem:[%s1 + $0x480] sm:$0xff]
  %v180 = vld [vmem:[%s1 + $0x488] sm:$0xff]
  %v181 = vld [vmem:[%s1 + $0x490] sm:$0xff]
  %v182 = vld [vmem:[%s1 + $0x498] sm:$0xff]
  %v183 = vld [vmem:[%s1 + $0x4a0] sm:$0xff]
  %v184 = vld [vmem:[%s1 + $0x4a8] sm:$0xff]
  %v185 = vld [vmem:[%s1 + $0x4b0] sm:$0xff]
  %v186 = vld [vmem:[%s1 + $0x4b8] sm:$0xff]
  %v187 = vld [vmem:[%s1 + $0x4c0] sm:$0xff]
  %v188 = vld [vmem:[%s1 + $0x4c8] sm:$0xff]
  %v189 = vld [vmem:[%s1 + $0x4d0] sm:$0xff]
  %v190 = vld [vmem:[%s1 + $0x4d8] sm:$0xff]
  %v191 = vld [vmem:[%s1 + $0x4e0] sm:$0xff]
  %v192 = vld [vmem:[%s1 + $0x4e8] sm:$0xff]
  %v193 = vld [vmem:[%s1 + $0x4f0] sm:$0xff]
  %v194 = vld [vmem:[%s1 + $0x4f8] sm:$0xff]
  %v195 = vld [vmem:[%s1 + $0x500] sm:$0xff]
  %v196 = vld [vmem:[%s1 + $0x508] sm:$0xff]
  %v197 = vld [vmem:[%s1 + $0x510] sm:$0xff]
  %v198 = vld [vmem:[%s1 + $0x518] sm:$0xff]
  %v199 = vld [vmem:[%s1 + $0x520] sm:$0xff]
  %v200 = vld [vmem:[%s1 + $0x528] sm:$0xff]
  %v201 = vld [vmem:[%s1 + $0x530] sm:$0xff]
  %v202 = vld [vmem:[%s1 + $0x538] sm:$0xff]
  %v203 = vld [vmem:[%s1 + $0x540] sm:$0xff]
  %v204 = vld [vmem:[%s1 + $0x548] sm:$0xff]
  %v205 = vld [vmem:[%s1 + $0x550] sm:$0xff]
  %v206 = vld [vmem:[%s1 + $0x558] sm:$0xff]
  %v207 = vld [vmem:[%s1 + $0x560] sm:$0xff]
  %v208 = vld [vmem:[%s1 + $0x568] sm:$0xff]
  %v209 = vld [vmem:[%s1 + $0x570] sm:$0xff]
  %v210 = vld [vmem:[%s1 + $0x578] sm:$0xff]
  %v211 = vld [vmem:[%s1 + $0x580] sm:$0xff]
  %v212 = vld [vmem:[%s1 + $0x588] sm:$0xff]
  %v213 = vld [vmem:[%s1 + $0x590] sm:$0xff]
  %v214 = vld [vmem:[%s1 + $0x598] sm:$0xff]
  %v215 = vld [vmem:[%s1 + $0x5a0] sm:$0xff]
  %v216 = vld [vmem:[%s1 + $0x5a8] sm:$0xff]
  %v217 = vld [vmem:[%s1 + $0x5b0] sm:$0xff]
  %v218 = vld [vmem:[%s1 + $0x5b8] sm:$0xff]
  %v219 = vld [vmem:[%s1 + $0x5c0] sm:$0xff]
  %v220 = vld [vmem:[%s1 + $0x5c8] sm:$0xff]
  %v221 = vld [vmem:[%s1 + $0x5d0] sm:$0xff]
  %v222 = vld [vmem:[%s1 + $0x5d8] sm:$0xff]
  %v223 = vld [vmem:[%s1 + $0x5e0] sm:$0xff]
  %v224 = vld [vmem:[%s1 + $0x5e8] sm:$0xff]
  %v225 = vld [vmem:[%s1 + $0x5f0] sm:$0xff]
  %v226 = vld [vmem:[%s1 + $0x5f8] sm:$0xff]
  %v227 = vld [vmem:[%s1 + $0x600] sm:$0xff]
  %v228 = vld [vmem:[%s1 + $0x608] sm:$0xff]
  %v229 = vld [vmem:[%s1 + $0x610] sm:$0xff]
  %v230 = vld [vmem:[%s1 + $0x618] sm:$0xff]
  %v231 = vld [vmem:[%s1 + $0x620] sm:$0xff]
  %v232 = vld [vmem:[%s1 + $0x628] sm:$0xff]
  %v233 = vld [vmem:[%s1 + $0x630] sm:$0xff]
  %v234 = vld [vmem:[%s1 + $0x638] sm:$0xff]
  %v235 = vld [vmem:[%s1 + $0x640] sm:$0xff]
  %v236 = vld [vmem:[%s1 + $0x648] sm:$0xff]
  %v237 = vld [vmem:[%s1 + $0x650] sm:$0xff]
  %v238 = vld [vmem:[%s1 + $0x658] sm:$0xff]
  %v239 = vld [vmem:[%s1 + $0x660] sm:$0xff]
  %v240 = vld [vmem:[%s1 + $0x668] sm:$0xff]
  %v241 = vld [vmem:[%s1 + $0x670] sm:$0xff]
  %v242 = vld [vmem:[%s1 + $0x678] sm:$0xff]
  %v243 = vld [vmem:[%s1 + $0x680] sm:$0xff]
  %v244 = vld [vmem:[%s1 + $0x688] sm:$0xff]
  %v245 = vld [vmem:[%s1 + $0x690] sm:$0xff]
  %v246 = vld [vmem:[%s1 + $0x698] sm:$0xff]
  %v247 = vld [vmem:[%s1 + $0x6a0] sm:$0xff]
  %v248 = vld [vmem:[%s1 + $0x6a8] sm:$0xff]
  %v249 = vld [vmem:[%s1 + $0x6b0] sm:$0xff]
  %v250 = vld [vmem:[%s1 + $0x6b8] sm:$0xff]
  %v251 = vld [vmem:[%s1 + $0x6c0] sm:$0xff]
  %v252 = vld [vmem:[%s1 + $0x6c8] sm:$0xff]
  %v253 = vld [vmem:[%s1 + $0x6d0] sm:$0xff]
  %v254 = vld [vmem:[%s1 + $0x6d8] sm:$0xff]
  %v255 = vld [vmem:[%s1 + $0x6e0] sm:$0xff]
  %v256 = vld [vmem:[%s1 + $0x6e8] sm:$0xff]
  %v257 = vld [vmem:[%s1 + $0x6f0] sm:$0xff]
  %v258 = vld [vmem:[%s1 + $0x6f8] sm:$0xff]
  %v259 = vld [vmem:[%s2] sm:$0xf]
  %v261 = vlaneseq
  %v262 = vshrl.u32 %v261, 7
  %v263 = vsub.s32 0, %v262
  %v264 = vrot.slane %v259, %v263
  %v265 = vlaneseq
  %v266 = vshrl.u32 %v265, 7
  %v267 = vsub.s32 1, %v266
  %v268 = vrot.slane %v259, %v267
  %v269 = vlaneseq
  %v270 = vshrl.u32 %v269, 7
  %v271 = vsub.s32 2, %v270
  %v272 = vrot.slane %v259, %v271
  %v273 = vlaneseq
  %v274 = vshrl.u32 %v273, 7
  %v275 = vsub.s32 3, %v274
  %v276 = vrot.slane %v259, %v275
  %v289 = vunpack.c.l.b16 %v27
  %v290 = vunpack.c.h.b16 %v27
  %v291 = vunpack.c.l.b16 %v28
  %v292 = vunpack.c.h.b16 %v28
  %v293 = vunpack.c.l.b16 %v29
  %v294 = vunpack.c.h.b16 %v29
  %v295 = vunpack.c.l.b16 %v30
  %v296 = vunpack.c.l.b16 %v31
  %v297 = vunpack.c.h.b16 %v31
  %v298 = vunpack.c.l.b16 %v32
  %v299 = vunpack.c.h.b16 %v32
  %v300 = vunpack.c.l.b16 %v33
  %v301 = vunpack.c.h.b16 %v33
  %v302 = vunpack.c.l.b16 %v34
  %v303 = vpack.c.b16 %v296, %v289
  %v304 = vpack.c.b16 %v297, %v290
  %v305 = vpack.c.b16 %v298, %v291
  %v306 = vpack.c.b16 %v299, %v292
  %v307 = vpack.c.b16 %v300, %v293
  %v308 = vpack.c.b16 %v301, %v294
  %v309 = vpack.c.b16 %v302, %v295
  %v541 = vunpack.c.l.b16 %v35
  %v542 = vunpack.c.h.b16 %v35
  %v543 = vunpack.c.l.b16 %v36
  %v544 = vunpack.c.h.b16 %v36
  %v545 = vunpack.c.l.b16 %v37
  %v546 = vunpack.c.h.b16 %v37
  %v547 = vunpack.c.l.b16 %v38
  %v548 = vunpack.c.h.b16 %v38
  %v549 = vunpack.c.l.b16 %v39
  %v550 = vunpack.c.h.b16 %v39
  %v551 = vunpack.c.l.b16 %v40
  %v552 = vunpack.c.h.b16 %v40
  %v553 = vunpack.c.l.b16 %v41
  %v554 = vunpack.c.h.b16 %v41
  %v555 = vunpack.c.l.b16 %v42
  %v556 = vunpack.c.h.b16 %v42
  %v557 = vunpack.c.l.b16 %v43
  %v558 = vunpack.c.h.b16 %v43
  %v559 = vunpack.c.l.b16 %v44
  %v560 = vunpack.c.h.b16 %v44
  %v561 = vunpack.c.l.b16 %v45
  %v562 = vunpack.c.h.b16 %v45
  %v563 = vunpack.c.l.b16 %v46
  %v564 = vunpack.c.h.b16 %v46
  %v565 = vunpack.c.l.b16 %v47
  %v566 = vunpack.c.h.b16 %v47
  %v567 = vunpack.c.l.b16 %v48
  %v568 = vunpack.c.h.b16 %v48
  %v569 = vunpack.c.l.b16 %v49
  %v570 = vunpack.c.h.b16 %v49
  %v571 = vunpack.c.l.b16 %v50
  %v572 = vunpack.c.h.b16 %v50
  %v573 = vunpack.c.l.b16 %v51
  %v574 = vunpack.c.h.b16 %v51
  %v575 = vunpack.c.l.b16 %v52
  %v576 = vunpack.c.h.b16 %v52
  %v577 = vunpack.c.l.b16 %v53
  %v578 = vunpack.c.h.b16 %v53
  %v579 = vunpack.c.l.b16 %v54
  %v580 = vunpack.c.h.b16 %v54
  %v581 = vunpack.c.l.b16 %v55
  %v582 = vunpack.c.h.b16 %v55
  %v583 = vunpack.c.l.b16 %v56
  %v584 = vunpack.c.h.b16 %v56
  %v585 = vunpack.c.l.b16 %v57
  %v586 = vunpack.c.h.b16 %v57
  %v587 = vunpack.c.l.b16 %v58
  %v588 = vunpack.c.h.b16 %v58
  %v589 = vunpack.c.l.b16 %v59
  %v590 = vunpack.c.h.b16 %v59
  %v591 = vunpack.c.l.b16 %v60
  %v592 = vunpack.c.h.b16 %v60
  %v593 = vunpack.c.l.b16 %v61
  %v594 = vunpack.c.h.b16 %v61
  %v595 = vunpack.c.l.b16 %v62
  %v596 = vunpack.c.h.b16 %v62
  %v597 = vunpack.c.l.b16 %v63
  %v598 = vunpack.c.h.b16 %v63
  %v599 = vunpack.c.l.b16 %v64
  %v600 = vunpack.c.h.b16 %v64
  %v601 = vunpack.c.l.b16 %v65
  %v602 = vunpack.c.h.b16 %v65
  %v603 = vunpack.c.l.b16 %v66
  %v604 = vunpack.c.h.b16 %v66
  %v605 = vunpack.c.l.b16 %v67
  %v606 = vunpack.c.h.b16 %v67
  %v607 = vunpack.c.l.b16 %v68
  %v608 = vunpack.c.h.b16 %v68
  %v609 = vunpack.c.l.b16 %v69
  %v610 = vunpack.c.h.b16 %v69
  %v611 = vunpack.c.l.b16 %v70
  %v612 = vunpack.c.h.b16 %v70
  %v613 = vunpack.c.l.b16 %v71
  %v614 = vunpack.c.h.b16 %v71
  %v615 = vunpack.c.l.b16 %v72
  %v616 = vunpack.c.h.b16 %v72
  %v617 = vunpack.c.l.b16 %v73
  %v618 = vunpack.c.h.b16 %v73
  %v619 = vunpack.c.l.b16 %v74
  %v620 = vunpack.c.h.b16 %v74
  %v621 = vunpack.c.l.b16 %v75
  %v622 = vunpack.c.h.b16 %v75
  %v623 = vunpack.c.l.b16 %v76
  %v624 = vunpack.c.h.b16 %v76
  %v625 = vunpack.c.l.b16 %v77
  %v626 = vunpack.c.h.b16 %v77
  %v627 = vunpack.c.l.b16 %v78
  %v628 = vunpack.c.h.b16 %v78
  %v629 = vunpack.c.l.b16 %v79
  %v630 = vunpack.c.h.b16 %v79
  %v631 = vunpack.c.l.b16 %v80
  %v632 = vunpack.c.h.b16 %v80
  %v633 = vunpack.c.l.b16 %v81
  %v634 = vunpack.c.h.b16 %v81
  %v635 = vunpack.c.l.b16 %v82
  %v636 = vunpack.c.h.b16 %v82
  %v637 = vunpack.c.l.b16 %v83
  %v638 = vunpack.c.h.b16 %v83
  %v639 = vunpack.c.l.b16 %v84
  %v640 = vunpack.c.h.b16 %v84
  %v641 = vunpack.c.l.b16 %v85
  %v642 = vunpack.c.h.b16 %v85
  %v643 = vunpack.c.l.b16 %v86
  %v644 = vunpack.c.h.b16 %v86
  %v645 = vunpack.c.l.b16 %v87
  %v646 = vunpack.c.h.b16 %v87
  %v647 = vunpack.c.l.b16 %v88
  %v648 = vunpack.c.h.b16 %v88
  %v649 = vunpack.c.l.b16 %v89
  %v650 = vunpack.c.h.b16 %v89
  %v651 = vunpack.c.l.b16 %v90
  %v652 = vunpack.c.h.b16 %v90
  %v653 = vunpack.c.l.b16 %v91
  %v654 = vunpack.c.h.b16 %v91
  %v655 = vunpack.c.l.b16 %v92
  %v656 = vunpack.c.h.b16 %v92
  %v657 = vunpack.c.l.b16 %v93
  %v658 = vunpack.c.h.b16 %v93
  %v659 = vunpack.c.l.b16 %v94
  %v660 = vunpack.c.h.b16 %v94
  %v661 = vunpack.c.l.b16 %v95
  %v662 = vunpack.c.h.b16 %v95
  %v663 = vunpack.c.l.b16 %v96
  %v664 = vunpack.c.h.b16 %v96
  %v665 = vunpack.c.l.b16 %v97
  %v666 = vunpack.c.h.b16 %v97
  %v667 = vunpack.c.l.b16 %v98
  %v668 = vunpack.c.h.b16 %v98
  %v669 = vunpack.c.l.b16 %v99
  %v670 = vunpack.c.h.b16 %v99
  %v671 = vunpack.c.l.b16 %v100
  %v672 = vunpack.c.h.b16 %v100
  %v673 = vunpack.c.l.b16 %v101
  %v674 = vunpack.c.h.b16 %v101
  %v675 = vunpack.c.l.b16 %v102
  %v676 = vunpack.c.h.b16 %v102
  %v677 = vunpack.c.l.b16 %v103
  %v678 = vunpack.c.h.b16 %v103
  %v679 = vunpack.c.l.b16 %v104
  %v680 = vunpack.c.h.b16 %v104
  %v681 = vunpack.c.l.b16 %v105
  %v682 = vunpack.c.h.b16 %v105
  %v683 = vunpack.c.l.b16 %v106
  %v684 = vunpack.c.h.b16 %v106
  %v685 = vunpack.c.l.b16 %v107
  %v686 = vunpack.c.h.b16 %v107
  %v687 = vunpack.c.l.b16 %v108
  %v688 = vunpack.c.h.b16 %v108
  %v689 = vunpack.c.l.b16 %v109
  %v690 = vunpack.c.h.b16 %v109
  %v691 = vunpack.c.l.b16 %v110
  %v692 = vunpack.c.h.b16 %v110
  %v693 = vunpack.c.l.b16 %v111
  %v694 = vunpack.c.h.b16 %v111
  %v695 = vunpack.c.l.b16 %v112
  %v696 = vunpack.c.h.b16 %v112
  %v697 = vunpack.c.l.b16 %v113
  %v698 = vunpack.c.h.b16 %v113
  %v699 = vunpack.c.l.b16 %v114
  %v700 = vunpack.c.h.b16 %v114
  %v701 = vunpack.c.l.b16 %v115
  %v702 = vunpack.c.h.b16 %v115
  %v703 = vunpack.c.l.b16 %v116
  %v704 = vunpack.c.h.b16 %v116
  %v705 = vunpack.c.l.b16 %v117
  %v706 = vunpack.c.h.b16 %v117
  %v707 = vunpack.c.l.b16 %v118
  %v708 = vunpack.c.h.b16 %v118
  %v709 = vunpack.c.l.b16 %v119
  %v710 = vunpack.c.h.b16 %v119
  %v711 = vunpack.c.l.b16 %v120
  %v712 = vunpack.c.h.b16 %v120
  %v713 = vunpack.c.l.b16 %v121
  %v714 = vunpack.c.h.b16 %v121
  %v715 = vunpack.c.l.b16 %v122
  %v716 = vunpack.c.h.b16 %v122
  %v717 = vunpack.c.l.b16 %v123
  %v718 = vunpack.c.h.b16 %v123
  %v719 = vunpack.c.l.b16 %v124
  %v720 = vunpack.c.h.b16 %v124
  %v721 = vunpack.c.l.b16 %v125
  %v722 = vunpack.c.h.b16 %v125
  %v723 = vunpack.c.l.b16 %v126
  %v724 = vunpack.c.h.b16 %v126
  %v725 = vunpack.c.l.b16 %v127
  %v726 = vunpack.c.h.b16 %v127
  %v727 = vunpack.c.l.b16 %v128
  %v728 = vunpack.c.h.b16 %v128
  %v729 = vunpack.c.l.b16 %v129
  %v730 = vunpack.c.h.b16 %v129
  %v731 = vunpack.c.l.b16 %v130
  %v732 = vunpack.c.h.b16 %v130
  %v733 = vunpack.c.l.b16 %v131
  %v734 = vunpack.c.h.b16 %v131
  %v735 = vunpack.c.l.b16 %v132
  %v736 = vunpack.c.h.b16 %v132
  %v737 = vunpack.c.l.b16 %v133
  %v738 = vunpack.c.h.b16 %v133
  %v739 = vunpack.c.l.b16 %v134
  %v740 = vunpack.c.h.b16 %v134
  %v741 = vunpack.c.l.b16 %v135
  %v742 = vunpack.c.h.b16 %v135
  %v743 = vunpack.c.l.b16 %v136
  %v744 = vunpack.c.h.b16 %v136
  %v745 = vunpack.c.l.b16 %v137
  %v746 = vunpack.c.h.b16 %v137
  %v747 = vunpack.c.l.b16 %v138
  %v748 = vunpack.c.h.b16 %v138
  %v749 = vunpack.c.l.b16 %v139
  %v750 = vunpack.c.h.b16 %v139
  %v751 = vunpack.c.l.b16 %v140
  %v752 = vunpack.c.h.b16 %v140
  %v753 = vunpack.c.l.b16 %v141
  %v754 = vunpack.c.h.b16 %v141
  %v755 = vunpack.c.l.b16 %v142
  %v756 = vunpack.c.h.b16 %v142
  %v757 = vunpack.c.l.b16 %v143
  %v758 = vunpack.c.h.b16 %v143
  %v759 = vunpack.c.l.b16 %v144
  %v760 = vunpack.c.h.b16 %v144
  %v761 = vunpack.c.l.b16 %v145
  %v762 = vunpack.c.h.b16 %v145
  %v763 = vunpack.c.l.b16 %v146
  %v764 = vunpack.c.h.b16 %v146
  %v765 = vunpack.c.l.b16 %v147
  %v766 = vunpack.c.h.b16 %v147
  %v767 = vunpack.c.l.b16 %v148
  %v768 = vunpack.c.h.b16 %v148
  %v769 = vunpack.c.l.b16 %v149
  %v770 = vunpack.c.h.b16 %v149
  %v771 = vunpack.c.l.b16 %v150
  %v772 = vunpack.c.h.b16 %v150
  %v773 = vunpack.c.l.b16 %v151
  %v774 = vunpack.c.h.b16 %v151
  %v775 = vunpack.c.l.b16 %v152
  %v776 = vunpack.c.h.b16 %v152
  %v777 = vunpack.c.l.b16 %v153
  %v778 = vunpack.c.h.b16 %v153
  %v779 = vunpack.c.l.b16 %v154
  %v780 = vunpack.c.h.b16 %v154
  %v781 = vunpack.c.l.b16 %v155
  %v782 = vunpack.c.h.b16 %v155
  %v783 = vunpack.c.l.b16 %v156
  %v784 = vunpack.c.h.b16 %v156
  %v785 = vunpack.c.l.b16 %v157
  %v786 = vunpack.c.h.b16 %v157
  %v787 = vunpack.c.l.b16 %v158
  %v788 = vunpack.c.h.b16 %v158
  %v789 = vunpack.c.l.b16 %v159
  %v790 = vunpack.c.h.b16 %v159
  %v791 = vunpack.c.l.b16 %v160
  %v792 = vunpack.c.h.b16 %v160
  %v793 = vunpack.c.l.b16 %v161
  %v794 = vunpack.c.h.b16 %v161
  %v795 = vunpack.c.l.b16 %v162
  %v796 = vunpack.c.h.b16 %v162
  %v797 = vunpack.c.l.b16 %v163
  %v798 = vunpack.c.h.b16 %v163
  %v799 = vunpack.c.l.b16 %v164
  %v800 = vunpack.c.h.b16 %v164
  %v801 = vunpack.c.l.b16 %v165
  %v802 = vunpack.c.h.b16 %v165
  %v803 = vunpack.c.l.b16 %v166
  %v804 = vunpack.c.h.b16 %v166
  %v805 = vunpack.c.l.b16 %v167
  %v806 = vunpack.c.h.b16 %v167
  %v807 = vunpack.c.l.b16 %v168
  %v808 = vunpack.c.h.b16 %v168
  %v809 = vunpack.c.l.b16 %v169
  %v810 = vunpack.c.h.b16 %v169
  %v811 = vunpack.c.l.b16 %v170
  %v812 = vunpack.c.h.b16 %v170
  %v813 = vunpack.c.l.b16 %v171
  %v814 = vunpack.c.h.b16 %v171
  %v815 = vunpack.c.l.b16 %v172
  %v816 = vunpack.c.h.b16 %v172
  %v817 = vunpack.c.l.b16 %v173
  %v818 = vunpack.c.h.b16 %v173
  %v819 = vunpack.c.l.b16 %v174
  %v820 = vunpack.c.h.b16 %v174
  %v821 = vunpack.c.l.b16 %v175
  %v822 = vunpack.c.h.b16 %v175
  %v823 = vunpack.c.l.b16 %v176
  %v824 = vunpack.c.h.b16 %v176
  %v825 = vunpack.c.l.b16 %v177
  %v826 = vunpack.c.h.b16 %v177
  %v827 = vunpack.c.l.b16 %v178
  %v828 = vunpack.c.h.b16 %v178
  %v829 = vunpack.c.l.b16 %v179
  %v830 = vunpack.c.h.b16 %v179
  %v831 = vunpack.c.l.b16 %v180
  %v832 = vunpack.c.h.b16 %v180
  %v833 = vunpack.c.l.b16 %v181
  %v834 = vunpack.c.h.b16 %v181
  %v835 = vunpack.c.l.b16 %v182
  %v836 = vunpack.c.h.b16 %v182
  %v837 = vunpack.c.l.b16 %v183
  %v838 = vunpack.c.h.b16 %v183
  %v839 = vunpack.c.l.b16 %v184
  %v840 = vunpack.c.h.b16 %v184
  %v841 = vunpack.c.l.b16 %v185
  %v842 = vunpack.c.h.b16 %v185
  %v843 = vunpack.c.l.b16 %v186
  %v844 = vunpack.c.h.b16 %v186
  %v845 = vunpack.c.l.b16 %v187
  %v846 = vunpack.c.h.b16 %v187
  %v847 = vunpack.c.l.b16 %v188
  %v848 = vunpack.c.h.b16 %v188
  %v849 = vunpack.c.l.b16 %v189
  %v850 = vunpack.c.h.b16 %v189
  %v851 = vunpack.c.l.b16 %v190
  %v852 = vunpack.c.h.b16 %v190
  %v853 = vunpack.c.l.b16 %v191
  %v854 = vunpack.c.h.b16 %v191
  %v855 = vunpack.c.l.b16 %v192
  %v856 = vunpack.c.h.b16 %v192
  %v857 = vunpack.c.l.b16 %v193
  %v858 = vunpack.c.h.b16 %v193
  %v859 = vunpack.c.l.b16 %v194
  %v860 = vunpack.c.h.b16 %v194
  %v861 = vunpack.c.l.b16 %v195
  %v862 = vunpack.c.h.b16 %v195
  %v863 = vunpack.c.l.b16 %v196
  %v864 = vunpack.c.h.b16 %v196
  %v865 = vunpack.c.l.b16 %v197
  %v866 = vunpack.c.h.b16 %v197
  %v867 = vunpack.c.l.b16 %v198
  %v868 = vunpack.c.h.b16 %v198
  %v869 = vunpack.c.l.b16 %v199
  %v870 = vunpack.c.h.b16 %v199
  %v871 = vunpack.c.l.b16 %v200
  %v872 = vunpack.c.h.b16 %v200
  %v873 = vunpack.c.l.b16 %v201
  %v874 = vunpack.c.h.b16 %v201
  %v875 = vunpack.c.l.b16 %v202
  %v876 = vunpack.c.h.b16 %v202
  %v877 = vunpack.c.l.b16 %v203
  %v878 = vunpack.c.h.b16 %v203
  %v879 = vunpack.c.l.b16 %v204
  %v880 = vunpack.c.h.b16 %v204
  %v881 = vunpack.c.l.b16 %v205
  %v882 = vunpack.c.h.b16 %v205
  %v883 = vunpack.c.l.b16 %v206
  %v884 = vunpack.c.h.b16 %v206
  %v885 = vunpack.c.l.b16 %v207
  %v886 = vunpack.c.h.b16 %v207
  %v887 = vunpack.c.l.b16 %v208
  %v888 = vunpack.c.h.b16 %v208
  %v889 = vunpack.c.l.b16 %v209
  %v890 = vunpack.c.h.b16 %v209
  %v891 = vunpack.c.l.b16 %v210
  %v892 = vunpack.c.h.b16 %v210
  %v893 = vunpack.c.l.b16 %v211
  %v894 = vunpack.c.h.b16 %v211
  %v895 = vunpack.c.l.b16 %v212
  %v896 = vunpack.c.h.b16 %v212
  %v897 = vunpack.c.l.b16 %v213
  %v898 = vunpack.c.h.b16 %v213
  %v899 = vunpack.c.l.b16 %v214
  %v900 = vunpack.c.h.b16 %v214
  %v901 = vunpack.c.l.b16 %v215
  %v902 = vunpack.c.h.b16 %v215
  %v903 = vunpack.c.l.b16 %v216
  %v904 = vunpack.c.h.b16 %v216
  %v905 = vunpack.c.l.b16 %v217
  %v906 = vunpack.c.h.b16 %v217
  %v907 = vunpack.c.l.b16 %v218
  %v908 = vunpack.c.h.b16 %v218
  %v909 = vunpack.c.l.b16 %v219
  %v910 = vunpack.c.h.b16 %v219
  %v911 = vunpack.c.l.b16 %v220
  %v912 = vunpack.c.h.b16 %v220
  %v913 = vunpack.c.l.b16 %v221
  %v914 = vunpack.c.h.b16 %v221
  %v915 = vunpack.c.l.b16 %v222
  %v916 = vunpack.c.h.b16 %v222
  %v917 = vunpack.c.l.b16 %v223
  %v918 = vunpack.c.h.b16 %v223
  %v919 = vunpack.c.l.b16 %v224
  %v920 = vunpack.c.h.b16 %v224
  %v921 = vunpack.c.l.b16 %v225
  %v922 = vunpack.c.h.b16 %v225
  %v923 = vunpack.c.l.b16 %v226
  %v924 = vunpack.c.h.b16 %v226
  %v925 = vunpack.c.l.b16 %v227
  %v926 = vunpack.c.h.b16 %v227
  %v927 = vunpack.c.l.b16 %v228
  %v928 = vunpack.c.h.b16 %v228
  %v929 = vunpack.c.l.b16 %v229
  %v930 = vunpack.c.h.b16 %v229
  %v931 = vunpack.c.l.b16 %v230
  %v932 = vunpack.c.h.b16 %v230
  %v933 = vunpack.c.l.b16 %v231
  %v934 = vunpack.c.h.b16 %v231
  %v935 = vunpack.c.l.b16 %v232
  %v936 = vunpack.c.h.b16 %v232
  %v937 = vunpack.c.l.b16 %v233
  %v938 = vunpack.c.h.b16 %v233
  %v939 = vunpack.c.l.b16 %v234
  %v940 = vunpack.c.h.b16 %v234
  %v941 = vunpack.c.l.b16 %v235
  %v942 = vunpack.c.h.b16 %v235
  %v943 = vunpack.c.l.b16 %v236
  %v944 = vunpack.c.h.b16 %v236
  %v945 = vunpack.c.l.b16 %v237
  %v946 = vunpack.c.h.b16 %v237
  %v947 = vunpack.c.l.b16 %v238
  %v948 = vunpack.c.h.b16 %v238
  %v949 = vunpack.c.l.b16 %v239
  %v950 = vunpack.c.h.b16 %v239
  %v951 = vunpack.c.l.b16 %v240
  %v952 = vunpack.c.h.b16 %v240
  %v953 = vunpack.c.l.b16 %v241
  %v954 = vunpack.c.h.b16 %v241
  %v955 = vunpack.c.l.b16 %v242
  %v956 = vunpack.c.h.b16 %v242
  %v957 = vunpack.c.l.b16 %v243
  %v958 = vunpack.c.h.b16 %v243
  %v959 = vunpack.c.l.b16 %v244
  %v960 = vunpack.c.h.b16 %v244
  %v961 = vunpack.c.l.b16 %v245
  %v962 = vunpack.c.h.b16 %v245
  %v963 = vunpack.c.l.b16 %v246
  %v964 = vunpack.c.h.b16 %v246
  %v965 = vunpack.c.l.b16 %v247
  %v966 = vunpack.c.h.b16 %v247
  %v967 = vunpack.c.l.b16 %v248
  %v968 = vunpack.c.h.b16 %v248
  %v969 = vunpack.c.l.b16 %v249
  %v970 = vunpack.c.h.b16 %v249
  %v971 = vunpack.c.l.b16 %v250
  %v972 = vunpack.c.h.b16 %v250
  %v973 = vunpack.c.l.b16 %v251
  %v974 = vunpack.c.h.b16 %v251
  %v975 = vunpack.c.l.b16 %v252
  %v976 = vunpack.c.h.b16 %v252
  %v977 = vunpack.c.l.b16 %v253
  %v978 = vunpack.c.h.b16 %v253
  %v979 = vunpack.c.l.b16 %v254
  %v980 = vunpack.c.h.b16 %v254
  %v981 = vunpack.c.l.b16 %v255
  %v982 = vunpack.c.h.b16 %v255
  %v983 = vunpack.c.l.b16 %v256
  %v984 = vunpack.c.h.b16 %v256
  %v985 = vunpack.c.l.b16 %v257
  %v986 = vunpack.c.h.b16 %v257
  %v987 = vunpack.c.l.b16 %v258
  %v988 = vunpack.c.h.b16 %v258
  %v989 = vpack.c.b16 %v545, %v541
  %v990 = vpack.c.b16 %v546, %v542
  %v991 = vpack.c.b16 %v547, %v543
  %v992 = vpack.c.b16 %v548, %v544
  %v993 = vpack.c.b16 %v553, %v549
  %v994 = vpack.c.b16 %v554, %v550
  %v995 = vpack.c.b16 %v555, %v551
  %v996 = vpack.c.b16 %v556, %v552
  %v997 = vpack.c.b16 %v561, %v557
  %v998 = vpack.c.b16 %v562, %v558
  %v999 = vpack.c.b16 %v563, %v559
  %v1000 = vpack.c.b16 %v564, %v560
  %v1001 = vpack.c.b16 %v569, %v565
  %v1002 = vpack.c.b16 %v570, %v566
  %v1003 = vpack.c.b16 %v571, %v567
  %v1004 = vpack.c.b16 %v572, %v568
  %v1005 = vpack.c.b16 %v577, %v573
  %v1006 = vpack.c.b16 %v578, %v574
  %v1007 = vpack.c.b16 %v579, %v575
  %v1008 = vpack.c.b16 %v580, %v576
  %v1009 = vpack.c.b16 %v585, %v581
  %v1010 = vpack.c.b16 %v586, %v582
  %v1011 = vpack.c.b16 %v587, %v583
  %v1012 = vpack.c.b16 %v588, %v584
  %v1013 = vpack.c.b16 %v593, %v589
  %v1014 = vpack.c.b16 %v594, %v590
  %v1015 = vpack.c.b16 %v595, %v591
  %v1016 = vpack.c.b16 %v596, %v592
  %v1017 = vpack.c.b16 %v601, %v597
  %v1018 = vpack.c.b16 %v602, %v598
  %v1019 = vpack.c.b16 %v603, %v599
  %v1020 = vpack.c.b16 %v604, %v600
  %v1021 = vpack.c.b16 %v609, %v605
  %v1022 = vpack.c.b16 %v610, %v606
  %v1023 = vpack.c.b16 %v611, %v607
  %v1024 = vpack.c.b16 %v612, %v608
  %v1025 = vpack.c.b16 %v617, %v613
  %v1026 = vpack.c.b16 %v618, %v614
  %v1027 = vpack.c.b16 %v619, %v615
  %v1028 = vpack.c.b16 %v620, %v616
  %v1029 = vpack.c.b16 %v625, %v621
  %v1030 = vpack.c.b16 %v626, %v622
  %v1031 = vpack.c.b16 %v627, %v623
  %v1032 = vpack.c.b16 %v628, %v624
  %v1033 = vpack.c.b16 %v633, %v629
  %v1034 = vpack.c.b16 %v634, %v630
  %v1035 = vpack.c.b16 %v635, %v631
  %v1036 = vpack.c.b16 %v636, %v632
  %v1037 = vpack.c.b16 %v641, %v637
  %v1038 = vpack.c.b16 %v642, %v638
  %v1039 = vpack.c.b16 %v643, %v639
  %v1040 = vpack.c.b16 %v644, %v640
  %v1041 = vpack.c.b16 %v649, %v645
  %v1042 = vpack.c.b16 %v650, %v646
  %v1043 = vpack.c.b16 %v651, %v647
  %v1044 = vpack.c.b16 %v652, %v648
  %v1045 = vpack.c.b16 %v657, %v653
  %v1046 = vpack.c.b16 %v658, %v654
  %v1047 = vpack.c.b16 %v659, %v655
  %v1048 = vpack.c.b16 %v660, %v656
  %v1049 = vpack.c.b16 %v665, %v661
  %v1050 = vpack.c.b16 %v666, %v662
  %v1051 = vpack.c.b16 %v667, %v663
  %v1052 = vpack.c.b16 %v668, %v664
  %v1053 = vpack.c.b16 %v673, %v669
  %v1054 = vpack.c.b16 %v674, %v670
  %v1055 = vpack.c.b16 %v675, %v671
  %v1056 = vpack.c.b16 %v676, %v672
  %v1057 = vpack.c.b16 %v681, %v677
  %v1058 = vpack.c.b16 %v682, %v678
  %v1059 = vpack.c.b16 %v683, %v679
  %v1060 = vpack.c.b16 %v684, %v680
  %v1061 = vpack.c.b16 %v689, %v685
  %v1062 = vpack.c.b16 %v690, %v686
  %v1063 = vpack.c.b16 %v691, %v687
  %v1064 = vpack.c.b16 %v692, %v688
  %v1065 = vpack.c.b16 %v697, %v693
  %v1066 = vpack.c.b16 %v698, %v694
  %v1067 = vpack.c.b16 %v699, %v695
  %v1068 = vpack.c.b16 %v700, %v696
  %v1069 = vpack.c.b16 %v705, %v701
  %v1070 = vpack.c.b16 %v706, %v702
  %v1071 = vpack.c.b16 %v707, %v703
  %v1072 = vpack.c.b16 %v708, %v704
  %v1073 = vpack.c.b16 %v713, %v709
  %v1074 = vpack.c.b16 %v714, %v710
  %v1075 = vpack.c.b16 %v715, %v711
  %v1076 = vpack.c.b16 %v716, %v712
  %v1077 = vpack.c.b16 %v721, %v717
  %v1078 = vpack.c.b16 %v722, %v718
  %v1079 = vpack.c.b16 %v723, %v719
  %v1080 = vpack.c.b16 %v724, %v720
  %v1081 = vpack.c.b16 %v729, %v725
  %v1082 = vpack.c.b16 %v730, %v726
  %v1083 = vpack.c.b16 %v731, %v727
  %v1084 = vpack.c.b16 %v732, %v728
  %v1085 = vpack.c.b16 %v737, %v733
  %v1086 = vpack.c.b16 %v738, %v734
  %v1087 = vpack.c.b16 %v739, %v735
  %v1088 = vpack.c.b16 %v740, %v736
  %v1089 = vpack.c.b16 %v745, %v741
  %v1090 = vpack.c.b16 %v746, %v742
  %v1091 = vpack.c.b16 %v747, %v743
  %v1092 = vpack.c.b16 %v748, %v744
  %v1093 = vpack.c.b16 %v753, %v749
  %v1094 = vpack.c.b16 %v754, %v750
  %v1095 = vpack.c.b16 %v755, %v751
  %v1096 = vpack.c.b16 %v756, %v752
  %v1097 = vpack.c.b16 %v761, %v757
  %v1098 = vpack.c.b16 %v762, %v758
  %v1099 = vpack.c.b16 %v763, %v759
  %v1100 = vpack.c.b16 %v764, %v760
  %v1101 = vpack.c.b16 %v769, %v765
  %v1102 = vpack.c.b16 %v770, %v766
  %v1103 = vpack.c.b16 %v771, %v767
  %v1104 = vpack.c.b16 %v772, %v768
  %v1105 = vpack.c.b16 %v777, %v773
  %v1106 = vpack.c.b16 %v778, %v774
  %v1107 = vpack.c.b16 %v779, %v775
  %v1108 = vpack.c.b16 %v780, %v776
  %v1109 = vpack.c.b16 %v785, %v781
  %v1110 = vpack.c.b16 %v786, %v782
  %v1111 = vpack.c.b16 %v787, %v783
  %v1112 = vpack.c.b16 %v788, %v784
  %v1113 = vpack.c.b16 %v793, %v789
  %v1114 = vpack.c.b16 %v794, %v790
  %v1115 = vpack.c.b16 %v795, %v791
  %v1116 = vpack.c.b16 %v796, %v792
  %v1117 = vpack.c.b16 %v801, %v797
  %v1118 = vpack.c.b16 %v802, %v798
  %v1119 = vpack.c.b16 %v803, %v799
  %v1120 = vpack.c.b16 %v804, %v800
  %v1121 = vpack.c.b16 %v809, %v805
  %v1122 = vpack.c.b16 %v810, %v806
  %v1123 = vpack.c.b16 %v811, %v807
  %v1124 = vpack.c.b16 %v812, %v808
  %v1125 = vpack.c.b16 %v817, %v813
  %v1126 = vpack.c.b16 %v818, %v814
  %v1127 = vpack.c.b16 %v819, %v815
  %v1128 = vpack.c.b16 %v820, %v816
  %v1129 = vpack.c.b16 %v825, %v821
  %v1130 = vpack.c.b16 %v826, %v822
  %v1131 = vpack.c.b16 %v827, %v823
  %v1132 = vpack.c.b16 %v828, %v824
  %v1133 = vpack.c.b16 %v833, %v829
  %v1134 = vpack.c.b16 %v834, %v830
  %v1135 = vpack.c.b16 %v835, %v831
  %v1136 = vpack.c.b16 %v836, %v832
  %v1137 = vpack.c.b16 %v841, %v837
  %v1138 = vpack.c.b16 %v842, %v838
  %v1139 = vpack.c.b16 %v843, %v839
  %v1140 = vpack.c.b16 %v844, %v840
  %v1141 = vpack.c.b16 %v849, %v845
  %v1142 = vpack.c.b16 %v850, %v846
  %v1143 = vpack.c.b16 %v851, %v847
  %v1144 = vpack.c.b16 %v852, %v848
  %v1145 = vpack.c.b16 %v857, %v853
  %v1146 = vpack.c.b16 %v858, %v854
  %v1147 = vpack.c.b16 %v859, %v855
  %v1148 = vpack.c.b16 %v860, %v856
  %v1149 = vpack.c.b16 %v865, %v861
  %v1150 = vpack.c.b16 %v866, %v862
  %v1151 = vpack.c.b16 %v867, %v863
  %v1152 = vpack.c.b16 %v868, %v864
  %v1153 = vpack.c.b16 %v873, %v869
  %v1154 = vpack.c.b16 %v874, %v870
  %v1155 = vpack.c.b16 %v875, %v871
  %v1156 = vpack.c.b16 %v876, %v872
  %v1157 = vpack.c.b16 %v881, %v877
  %v1158 = vpack.c.b16 %v882, %v878
  %v1159 = vpack.c.b16 %v883, %v879
  %v1160 = vpack.c.b16 %v884, %v880
  %v1161 = vpack.c.b16 %v889, %v885
  %v1162 = vpack.c.b16 %v890, %v886
  %v1163 = vpack.c.b16 %v891, %v887
  %v1164 = vpack.c.b16 %v892, %v888
  %v1165 = vpack.c.b16 %v897, %v893
  %v1166 = vpack.c.b16 %v898, %v894
  %v1167 = vpack.c.b16 %v899, %v895
  %v1168 = vpack.c.b16 %v900, %v896
  %v1169 = vpack.c.b16 %v905, %v901
  %v1170 = vpack.c.b16 %v906, %v902
  %v1171 = vpack.c.b16 %v907, %v903
  %v1172 = vpack.c.b16 %v908, %v904
  %v1173 = vpack.c.b16 %v913, %v909
  %v1174 = vpack.c.b16 %v914, %v910
  %v1175 = vpack.c.b16 %v915, %v911
  %v1176 = vpack.c.b16 %v916, %v912
  %v1177 = vpack.c.b16 %v921, %v917
  %v1178 = vpack.c.b16 %v922, %v918
  %v1179 = vpack.c.b16 %v923, %v919
  %v1180 = vpack.c.b16 %v924, %v920
  %v1181 = vpack.c.b16 %v929, %v925
  %v1182 = vpack.c.b16 %v930, %v926
  %v1183 = vpack.c.b16 %v931, %v927
  %v1184 = vpack.c.b16 %v932, %v928
  %v1185 = vpack.c.b16 %v937, %v933
  %v1186 = vpack.c.b16 %v938, %v934
  %v1187 = vpack.c.b16 %v939, %v935
  %v1188 = vpack.c.b16 %v940, %v936
  %v1189 = vpack.c.b16 %v945, %v941
  %v1190 = vpack.c.b16 %v946, %v942
  %v1191 = vpack.c.b16 %v947, %v943
  %v1192 = vpack.c.b16 %v948, %v944
  %v1193 = vpack.c.b16 %v953, %v949
  %v1194 = vpack.c.b16 %v954, %v950
  %v1195 = vpack.c.b16 %v955, %v951
  %v1196 = vpack.c.b16 %v956, %v952
  %v1197 = vpack.c.b16 %v961, %v957
  %v1198 = vpack.c.b16 %v962, %v958
  %v1199 = vpack.c.b16 %v963, %v959
  %v1200 = vpack.c.b16 %v964, %v960
  %v1201 = vpack.c.b16 %v969, %v965
  %v1202 = vpack.c.b16 %v970, %v966
  %v1203 = vpack.c.b16 %v971, %v967
  %v1204 = vpack.c.b16 %v972, %v968
  %v1205 = vpack.c.b16 %v977, %v973
  %v1206 = vpack.c.b16 %v978, %v974
  %v1207 = vpack.c.b16 %v979, %v975
  %v1208 = vpack.c.b16 %v980, %v976
  %v1209 = vpack.c.b16 %v985, %v981
  %v1210 = vpack.c.b16 %v986, %v982
  %v1211 = vpack.c.b16 %v987, %v983
  %v1212 = vpack.c.b16 %v988, %v984
  %1437 = vmatprep.subr.bf16.mxu0 %v1018
  %1438 = vmatpush1.bf16.msra.mxu0 %v1017
  %1439 = vmatprep.subr.bf16.mxu0 %v1014
  %1440 = vmatpush1.bf16.msra.mxu0 %v1013
  %1441 = vmatprep.subr.bf16.mxu0 %v1010
  %1442 = vmatpush1.bf16.msra.mxu0 %v1009
  %1443 = vmatprep.subr.bf16.mxu0 %v1006
  %1444 = vmatpush1.bf16.msra.mxu0 %v1005
  %1445 = vmatprep.subr.bf16.mxu0 %v1002
  %1446 = vmatpush1.bf16.msra.mxu0 %v1001
  %1447 = vmatprep.subr.bf16.mxu0 %v998
  %1448 = vmatpush1.bf16.msra.mxu0 %v997
  %1449 = vmatprep.subr.bf16.mxu0 %v994
  %1450 = vmatpush1.bf16.msra.mxu0 %v993
  %1451 = vmatprep.subr.bf16.mxu0 %v990
  %1452 = vmatpush1.bf16.msra.mxu0 %v989
  %1453 = vmatprep.subr.bf16.mxu0 %v1050
  %1454 = vmatpush2.bf16.msra.mxu0 %v1049
  %1455 = vmatprep.subr.bf16.mxu0 %v1046
  %1456 = vmatpush2.bf16.msra.mxu0 %v1045
  %1457 = vmatprep.subr.bf16.mxu0 %v1042
  %1458 = vmatpush2.bf16.msra.mxu0 %v1041
  %1459 = vmatprep.subr.bf16.mxu0 %v1038
  %1460 = vmatpush2.bf16.msra.mxu0 %v1037
  %1461 = vmatprep.subr.bf16.mxu0 %v1034
  %1462 = vmatpush2.bf16.msra.mxu0 %v1033
  %1463 = vmatprep.subr.bf16.mxu0 %v1030
  %1464 = vmatpush2.bf16.msra.mxu0 %v1029
  %1465 = vmatprep.subr.bf16.mxu0 %v1026
  %1466 = vmatpush2.bf16.msra.mxu0 %v1025
  %1467 = vmatprep.subr.bf16.mxu0 %v1022
  %1468 = vmatpush2.bf16.msra.mxu0 %v1021
  %1469 = vmatprep.mubr.bf16.mxu0 %v304
  %1470 = vmatmul.mubr.bf16.gmra.mxu0 %v303
  %v1471 = vpop.f32.mrf.mxu0
  %v1472 = vadd.f32 %v264, %v1471
  %v1473 = vpop.f32.mrf.mxu0
  %v1474 = vadd.f32 %v268, %v1473
  %v1475 = vpop.f32.mrf.mxu0
  %v1476 = vadd.f32 %v264, %v1475
  %v1477 = vpop.f32.mrf.mxu0
  %v1478 = vadd.f32 %v268, %v1477
  %1479 = vdwg.mxu0
  %1480 = vmatprep.subr.bf16.mxu0 %v1082
  %1481 = vmatpush1.bf16.msra.mxu0 %v1081
  %1482 = vmatprep.subr.bf16.mxu0 %v1078
  %1483 = vmatpush1.bf16.msra.mxu0 %v1077
  %1484 = vmatprep.subr.bf16.mxu0 %v1074
  %1485 = vmatpush1.bf16.msra.mxu0 %v1073
  %1486 = vmatprep.subr.bf16.mxu0 %v1070
  %1487 = vmatpush1.bf16.msra.mxu0 %v1069
  %1488 = vmatprep.subr.bf16.mxu0 %v1066
  %1489 = vmatpush1.bf16.msra.mxu0 %v1065
  %1490 = vmatprep.subr.bf16.mxu0 %v1062
  %1491 = vmatpush1.bf16.msra.mxu0 %v1061
  %1492 = vmatprep.subr.bf16.mxu0 %v1058
  %1493 = vmatpush1.bf16.msra.mxu0 %v1057
  %1494 = vmatprep.subr.bf16.mxu0 %v1054
  %1495 = vmatpush1.bf16.msra.mxu0 %v1053
  %1496 = vmatprep.subr.bf16.mxu0 %v1114
  %1497 = vmatpush2.bf16.msra.mxu0 %v1113
  %1498 = vmatprep.subr.bf16.mxu0 %v1110
  %1499 = vmatpush2.bf16.msra.mxu0 %v1109
  %1500 = vmatprep.subr.bf16.mxu0 %v1106
  %1501 = vmatpush2.bf16.msra.mxu0 %v1105
  %1502 = vmatprep.subr.bf16.mxu0 %v1102
  %1503 = vmatpush2.bf16.msra.mxu0 %v1101
  %1504 = vmatprep.subr.bf16.mxu0 %v1098
  %1505 = vmatpush2.bf16.msra.mxu0 %v1097
  %1506 = vmatprep.subr.bf16.mxu0 %v1094
  %1507 = vmatpush2.bf16.msra.mxu0 %v1093
  %1508 = vmatprep.subr.bf16.mxu0 %v1090
  %1509 = vmatpush2.bf16.msra.mxu0 %v1089
  %1510 = vmatprep.subr.bf16.mxu0 %v1086
  %1511 = vmatpush2.bf16.msra.mxu0 %v1085
  %1512 = vmatprep.mubr.bf16.mxu0 %v306
  %1513 = vmatmul.mubr.bf16.gmra.mxu0 %v305
  %v1514 = vpop.f32.mrf.mxu0
  %v1515 = vadd.f32 %v1472, %v1514
  %v1516 = vpop.f32.mrf.mxu0
  %v1517 = vadd.f32 %v1474, %v1516
  %v1518 = vpop.f32.mrf.mxu0
  %v1519 = vadd.f32 %v1476, %v1518
  %v1520 = vpop.f32.mrf.mxu0
  %v1521 = vadd.f32 %v1478, %v1520
  %1522 = vdwg.mxu0
  %1523 = vmatprep.subr.bf16.mxu0 %v1146
  %1524 = vmatpush1.bf16.msra.mxu0 %v1145
  %1525 = vmatprep.subr.bf16.mxu0 %v1142
  %1526 = vmatpush1.bf16.msra.mxu0 %v1141
  %1527 = vmatprep.subr.bf16.mxu0 %v1138
  %1528 = vmatpush1.bf16.msra.mxu0 %v1137
  %1529 = vmatprep.subr.bf16.mxu0 %v1134
  %1530 = vmatpush1.bf16.msra.mxu0 %v1133
  %1531 = vmatprep.subr.bf16.mxu0 %v1130
  %1532 = vmatpush1.bf16.msra.mxu0 %v1129
  %1533 = vmatprep.subr.bf16.mxu0 %v1126
  %1534 = vmatpush1.bf16.msra.mxu0 %v1125
  %1535 = vmatprep.subr.bf16.mxu0 %v1122
  %1536 = vmatpush1.bf16.msra.mxu0 %v1121
  %1537 = vmatprep.subr.bf16.mxu0 %v1118
  %1538 = vmatpush1.bf16.msra.mxu0 %v1117
  %1539 = vmatprep.subr.bf16.mxu0 %v1178
  %1540 = vmatpush2.bf16.msra.mxu0 %v1177
  %1541 = vmatprep.subr.bf16.mxu0 %v1174
  %1542 = vmatpush2.bf16.msra.mxu0 %v1173
  %1543 = vmatprep.subr.bf16.mxu0 %v1170
  %1544 = vmatpush2.bf16.msra.mxu0 %v1169
  %1545 = vmatprep.subr.bf16.mxu0 %v1166
  %1546 = vmatpush2.bf16.msra.mxu0 %v1165
  %1547 = vmatprep.subr.bf16.mxu0 %v1162
  %1548 = vmatpush2.bf16.msra.mxu0 %v1161
  %1549 = vmatprep.subr.bf16.mxu0 %v1158
  %1550 = vmatpush2.bf16.msra.mxu0 %v1157
  %1551 = vmatprep.subr.bf16.mxu0 %v1154
  %1552 = vmatpush2.bf16.msra.mxu0 %v1153
  %1553 = vmatprep.subr.bf16.mxu0 %v1150
  %1554 = vmatpush2.bf16.msra.mxu0 %v1149
  %1555 = vmatprep.mubr.bf16.mxu0 %v308
  %1556 = vmatmul.mubr.bf16.gmra.mxu0 %v307
  %v1557 = vpop.f32.mrf.mxu0
  %v1558 = vadd.f32 %v1515, %v1557
  %v1559 = vpop.f32.mrf.mxu0
  %v1560 = vadd.f32 %v1517, %v1559
  %v1561 = vpop.f32.mrf.mxu0
  %v1562 = vadd.f32 %v1519, %v1561
  %v1563 = vpop.f32.mrf.mxu0
  %v1564 = vadd.f32 %v1521, %v1563
  %1565 = vdwg.mxu0
  %1566 = vmatprep.subr.bf16.mxu0 %v1210
  %1567 = vmatpush1.bf16.msra.mxu0 %v1209
  %1568 = vmatprep.subr.bf16.mxu0 %v1206
  %1569 = vmatpush1.bf16.msra.mxu0 %v1205
  %1570 = vmatprep.subr.bf16.mxu0 %v1202
  %1571 = vmatpush1.bf16.msra.mxu0 %v1201
  %1572 = vmatprep.subr.bf16.mxu0 %v1198
  %1573 = vmatpush1.bf16.msra.mxu0 %v1197
  %1574 = vmatprep.subr.bf16.mxu0 %v1194
  %1575 = vmatpush1.bf16.msra.mxu0 %v1193
  %1576 = vmatprep.subr.bf16.mxu0 %v1190
  %1577 = vmatpush1.bf16.msra.mxu0 %v1189
  %1578 = vmatprep.subr.bf16.mxu0 %v1186
  %1579 = vmatpush1.bf16.msra.mxu0 %v1185
  %1580 = vmatprep.subr.bf16.mxu0 %v1182
  %1581 = vmatpush1.bf16.msra.mxu0 %v1181
  %1582 = vmatprep.subr.bf16.mxu0 0
  %1583 = vmatpush2.bf16.msra.mxu0 0
  %1584 = vmatprep.subr.bf16.mxu0 0
  %1585 = vmatpush2.bf16.msra.mxu0 0
  %1586 = vmatprep.subr.bf16.mxu0 0
  %1587 = vmatpush2.bf16.msra.mxu0 0
  %1588 = vmatprep.subr.bf16.mxu0 0
  %1589 = vmatpush2.bf16.msra.mxu0 0
  %1590 = vmatprep.subr.bf16.mxu0 0
  %1591 = vmatpush2.bf16.msra.mxu0 0
  %1592 = vmatprep.subr.bf16.mxu0 0
  %1593 = vmatpush2.bf16.msra.mxu0 0
  %1594 = vmatprep.subr.bf16.mxu0 0
  %1595 = vmatpush2.bf16.msra.mxu0 0
  %1596 = vmatprep.subr.bf16.mxu0 0
  %1597 = vmatpush2.bf16.msra.mxu0 0
  %1598 = vmatprep.mubr.bf16.mxu0 0
  %1599 = vmatmul.mubr.bf16.gmra.mxu0 %v309
  %v1600 = vpop.f32.mrf.mxu0
  %v1601 = vadd.f32 %v1558, %v1600
  %v1602 = vpop.f32.mrf.mxu0
  %v1603 = vadd.f32 %v1560, %v1602
  %v1604 = vpop.f32.mrf.mxu0
  %v1605 = vadd.f32 %v1562, %v1604
  %v1606 = vpop.f32.mrf.mxu0
  %v1607 = vadd.f32 %v1564, %v1606
  %1608 = vdwg.mxu0
  %1609 = vmatprep.subr.bf16.mxu0 %v1020
  %1610 = vmatpush1.bf16.msra.mxu0 %v1019
  %1611 = vmatprep.subr.bf16.mxu0 %v1016
  %1612 = vmatpush1.bf16.msra.mxu0 %v1015
  %1613 = vmatprep.subr.bf16.mxu0 %v1012
  %1614 = vmatpush1.bf16.msra.mxu0 %v1011
  %1615 = vmatprep.subr.bf16.mxu0 %v1008
  %1616 = vmatpush1.bf16.msra.mxu0 %v1007
  %1617 = vmatprep.subr.bf16.mxu0 %v1004
  %1618 = vmatpush1.bf16.msra.mxu0 %v1003
  %1619 = vmatprep.subr.bf16.mxu0 %v1000
  %1620 = vmatpush1.bf16.msra.mxu0 %v999
  %1621 = vmatprep.subr.bf16.mxu0 %v996
  %1622 = vmatpush1.bf16.msra.mxu0 %v995
  %1623 = vmatprep.subr.bf16.mxu0 %v992
  %1624 = vmatpush1.bf16.msra.mxu0 %v991
  %1625 = vmatprep.subr.bf16.mxu0 %v1052
  %1626 = vmatpush2.bf16.msra.mxu0 %v1051
  %1627 = vmatprep.subr.bf16.mxu0 %v1048
  %1628 = vmatpush2.bf16.msra.mxu0 %v1047
  %1629 = vmatprep.subr.bf16.mxu0 %v1044
  %1630 = vmatpush2.bf16.msra.mxu0 %v1043
  %1631 = vmatprep.subr.bf16.mxu0 %v1040
  %1632 = vmatpush2.bf16.msra.mxu0 %v1039
  %1633 = vmatprep.subr.bf16.mxu0 %v1036
  %1634 = vmatpush2.bf16.msra.mxu0 %v1035
  %1635 = vmatprep.subr.bf16.mxu0 %v1032
  %1636 = vmatpush2.bf16.msra.mxu0 %v1031
  %1637 = vmatprep.subr.bf16.mxu0 %v1028
  %1638 = vmatpush2.bf16.msra.mxu0 %v1027
  %1639 = vmatprep.subr.bf16.mxu0 %v1024
  %1640 = vmatpush2.bf16.msra.mxu0 %v1023
  %1641 = vmatprep.mubr.bf16.mxu0 %v304
  %1642 = vmatmul.mubr.bf16.gmra.mxu0 %v303
  %v1643 = vpop.f32.mrf.mxu0
  %v1644 = vadd.f32 %v272, %v1643
  %v1645 = vpop.f32.mrf.mxu0
  %v1646 = vadd.f32 %v276, %v1645
  %v1647 = vpop.f32.mrf.mxu0
  %v1648 = vadd.f32 %v272, %v1647
  %v1649 = vpop.f32.mrf.mxu0
  %v1650 = vadd.f32 %v276, %v1649
  %1651 = vdwg.mxu0
  %1652 = vmatprep.subr.bf16.mxu0 %v1084
  %1653 = vmatpush1.bf16.msra.mxu0 %v1083
  %1654 = vmatprep.subr.bf16.mxu0 %v1080
  %1655 = vmatpush1.bf16.msra.mxu0 %v1079
  %1656 = vmatprep.subr.bf16.mxu0 %v1076
  %1657 = vmatpush1.bf16.msra.mxu0 %v1075
  %1658 = vmatprep.subr.bf16.mxu0 %v1072
  %1659 = vmatpush1.bf16.msra.mxu0 %v1071
  %1660 = vmatprep.subr.bf16.mxu0 %v1068
  %1661 = vmatpush1.bf16.msra.mxu0 %v1067
  %1662 = vmatprep.subr.bf16.mxu0 %v1064
  %1663 = vmatpush1.bf16.msra.mxu0 %v1063
  %1664 = vmatprep.subr.bf16.mxu0 %v1060
  %1665 = vmatpush1.bf16.msra.mxu0 %v1059
  %1666 = vmatprep.subr.bf16.mxu0 %v1056
  %1667 = vmatpush1.bf16.msra.mxu0 %v1055
  %1668 = vmatprep.subr.bf16.mxu0 %v1116
  %1669 = vmatpush2.bf16.msra.mxu0 %v1115
  %1670 = vmatprep.subr.bf16.mxu0 %v1112
  %1671 = vmatpush2.bf16.msra.mxu0 %v1111
  %1672 = vmatprep.subr.bf16.mxu0 %v1108
  %1673 = vmatpush2.bf16.msra.mxu0 %v1107
  %1674 = vmatprep.subr.bf16.mxu0 %v1104
  %1675 = vmatpush2.bf16.msra.mxu0 %v1103
  %1676 = vmatprep.subr.bf16.mxu0 %v1100
  %1677 = vmatpush2.bf16.msra.mxu0 %v1099
  %1678 = vmatprep.subr.bf16.mxu0 %v1096
  %1679 = vmatpush2.bf16.msra.mxu0 %v1095
  %1680 = vmatprep.subr.bf16.mxu0 %v1092
  %1681 = vmatpush2.bf16.msra.mxu0 %v1091
  %1682 = vmatprep.subr.bf16.mxu0 %v1088
  %1683 = vmatpush2.bf16.msra.mxu0 %v1087
  %1684 = vmatprep.mubr.bf16.mxu0 %v306
  %1685 = vmatmul.mubr.bf16.gmra.mxu0 %v305
  %v1686 = vpop.f32.mrf.mxu0
  %v1687 = vadd.f32 %v1644, %v1686
  %v1688 = vpop.f32.mrf.mxu0
  %v1689 = vadd.f32 %v1646, %v1688
  %v1690 = vpop.f32.mrf.mxu0
  %v1691 = vadd.f32 %v1648, %v1690
  %v1692 = vpop.f32.mrf.mxu0
  %v1693 = vadd.f32 %v1650, %v1692
  %1694 = vdwg.mxu0
  %1695 = vmatprep.subr.bf16.mxu0 %v1148
  %1696 = vmatpush1.bf16.msra.mxu0 %v1147
  %1697 = vmatprep.subr.bf16.mxu0 %v1144
  %1698 = vmatpush1.bf16.msra.mxu0 %v1143
  %1699 = vmatprep.subr.bf16.mxu0 %v1140
  %1700 = vmatpush1.bf16.msra.mxu0 %v1139
  %1701 = vmatprep.subr.bf16.mxu0 %v1136
  %1702 = vmatpush1.bf16.msra.mxu0 %v1135
  %1703 = vmatprep.subr.bf16.mxu0 %v1132
  %1704 = vmatpush1.bf16.msra.mxu0 %v1131
  %1705 = vmatprep.subr.bf16.mxu0 %v1128
  %1706 = vmatpush1.bf16.msra.mxu0 %v1127
  %1707 = vmatprep.subr.bf16.mxu0 %v1124
  %1708 = vmatpush1.bf16.msra.mxu0 %v1123
  %1709 = vmatprep.subr.bf16.mxu0 %v1120
  %1710 = vmatpush1.bf16.msra.mxu0 %v1119
  %1711 = vmatprep.subr.bf16.mxu0 %v1180
  %1712 = vmatpush2.bf16.msra.mxu0 %v1179
  %1713 = vmatprep.subr.bf16.mxu0 %v1176
  %1714 = vmatpush2.bf16.msra.mxu0 %v1175
  %1715 = vmatprep.subr.bf16.mxu0 %v1172
  %1716 = vmatpush2.bf16.msra.mxu0 %v1171
  %1717 = vmatprep.subr.bf16.mxu0 %v1168
  %1718 = vmatpush2.bf16.msra.mxu0 %v1167
  %1719 = vmatprep.subr.bf16.mxu0 %v1164
  %1720 = vmatpush2.bf16.msra.mxu0 %v1163
  %1721 = vmatprep.subr.bf16.mxu0 %v1160
  %1722 = vmatpush2.bf16.msra.mxu0 %v1159
  %1723 = vmatprep.subr.bf16.mxu0 %v1156
  %1724 = vmatpush2.bf16.msra.mxu0 %v1155
  %1725 = vmatprep.subr.bf16.mxu0 %v1152
  %1726 = vmatpush2.bf16.msra.mxu0 %v1151
  %1727 = vmatprep.mubr.bf16.mxu0 %v308
  %1728 = vmatmul.mubr.bf16.gmra.mxu0 %v307
  %v1729 = vpop.f32.mrf.mxu0
  %v1730 = vadd.f32 %v1687, %v1729
  %v1731 = vpop.f32.mrf.mxu0
  %v1732 = vadd.f32 %v1689, %v1731
  %v1733 = vpop.f32.mrf.mxu0
  %v1734 = vadd.f32 %v1691, %v1733
  %v1735 = vpop.f32.mrf.mxu0
  %v1736 = vadd.f32 %v1693, %v1735
  %1737 = vdwg.mxu0
  %1738 = vmatprep.subr.bf16.mxu0 %v1212
  %1739 = vmatpush1.bf16.msra.mxu0 %v1211
  %1740 = vmatprep.subr.bf16.mxu0 %v1208
  %1741 = vmatpush1.bf16.msra.mxu0 %v1207
  %1742 = vmatprep.subr.bf16.mxu0 %v1204
  %1743 = vmatpush1.bf16.msra.mxu0 %v1203
  %1744 = vmatprep.subr.bf16.mxu0 %v1200
  %1745 = vmatpush1.bf16.msra.mxu0 %v1199
  %1746 = vmatprep.subr.bf16.mxu0 %v1196
  %1747 = vmatpush1.bf16.msra.mxu0 %v1195
  %1748 = vmatprep.subr.bf16.mxu0 %v1192
  %1749 = vmatpush1.bf16.msra.mxu0 %v1191
  %1750 = vmatprep.subr.bf16.mxu0 %v1188
  %1751 = vmatpush1.bf16.msra.mxu0 %v1187
  %1752 = vmatprep.subr.bf16.mxu0 %v1184
  %1753 = vmatpush1.bf16.msra.mxu0 %v1183
  %1754 = vmatprep.subr.bf16.mxu0 0
  %1755 = vmatpush2.bf16.msra.mxu0 0
  %1756 = vmatprep.subr.bf16.mxu0 0
  %1757 = vmatpush2.bf16.msra.mxu0 0
  %1758 = vmatprep.subr.bf16.mxu0 0
  %1759 = vmatpush2.bf16.msra.mxu0 0
  %1760 = vmatprep.subr.bf16.mxu0 0
  %1761 = vmatpush2.bf16.msra.mxu0 0
  %1762 = vmatprep.subr.bf16.mxu0 0
  %1763 = vmatpush2.bf16.msra.mxu0 0
  %1764 = vmatprep.subr.bf16.mxu0 0
  %1765 = vmatpush2.bf16.msra.mxu0 0
  %1766 = vmatprep.subr.bf16.mxu0 0
  %1767 = vmatpush2.bf16.msra.mxu0 0
  %1768 = vmatprep.subr.bf16.mxu0 0
  %1769 = vmatpush2.bf16.msra.mxu0 0
  %1770 = vmatprep.mubr.bf16.mxu0 0
  %1771 = vmatmul.mubr.bf16.gmra.mxu0 %v309
  %v1772 = vpop.f32.mrf.mxu0
  %v1773 = vadd.f32 %v1730, %v1772
  %v1774 = vpop.f32.mrf.mxu0
  %v1775 = vadd.f32 %v1732, %v1774
  %v1776 = vpop.f32.mrf.mxu0
  %v1777 = vadd.f32 %v1734, %v1776
  %v1778 = vpop.f32.mrf.mxu0
  %v1779 = vadd.f32 %v1736, %v1778
  %1780 = vdwg.mxu0
  %v1781 = vmax.f32 %v1601, 0.0
  %v1782 = vmax.f32 %v1603, 0.0
  %v1783 = vmax.f32 %v1773, 0.0
  %v1784 = vmax.f32 %v1775, 0.0
  %v1785 = vmax.f32 %v1605, 0.0
  %v1786 = vmax.f32 %v1607, 0.0
  %v1787 = vmax.f32 %v1777, 0.0
  %v1788 = vmax.f32 %v1779, 0.0
  %v1789 = vpack.c.bf16 %v1785, %v1781
  %v1790 = vpack.c.bf16 %v1786, %v1782
  %v1791 = vpack.c.bf16 %v1787, %v1783
  %v1792 = vpack.c.bf16 %v1788, %v1784
  %v1793 = vld [vmem:[%s3] sm:$0xff]
  %v1794 = vld [vmem:[%s3 + $0x8] sm:$0xff]
  %v1795 = vld [vmem:[%s3 + $0x10] sm:$0xff]
  %v1796 = vld [vmem:[%s3 + $0x18] sm:$0xff]
  %v1797 = vld [vmem:[%s3 + $0x20] sm:$0xff]
  %v1798 = vld [vmem:[%s3 + $0x28] sm:$0xff]
  %v1799 = vld [vmem:[%s3 + $0x30] sm:$0xff]
  %v1800 = vld [vmem:[%s3 + $0x38] sm:$0xff]
  %v1801 = vld [vmem:[%s3 + $0x40] sm:$0xff]
  %v1802 = vld [vmem:[%s3 + $0x48] sm:$0xff]
  %v1803 = vld [vmem:[%s3 + $0x50] sm:$0xff]
  %v1804 = vld [vmem:[%s3 + $0x58] sm:$0xff]
  %v1805 = vld [vmem:[%s3 + $0x60] sm:$0xff]
  %v1806 = vld [vmem:[%s3 + $0x68] sm:$0xff]
  %v1807 = vld [vmem:[%s3 + $0x70] sm:$0xff]
  %v1808 = vld [vmem:[%s3 + $0x78] sm:$0xff]
  %v1809 = vld [vmem:[%s3 + $0x80] sm:$0xff]
  %v1810 = vld [vmem:[%s3 + $0x88] sm:$0xff]
  %v1811 = vld [vmem:[%s3 + $0x90] sm:$0xff]
  %v1812 = vld [vmem:[%s3 + $0x98] sm:$0xff]
  %v1813 = vld [vmem:[%s3 + $0xa0] sm:$0xff]
  %v1814 = vld [vmem:[%s3 + $0xa8] sm:$0xff]
  %v1815 = vld [vmem:[%s3 + $0xb0] sm:$0xff]
  %v1816 = vld [vmem:[%s3 + $0xb8] sm:$0xff]
  %v1817 = vld [vmem:[%s3 + $0xc0] sm:$0xff]
  %v1818 = vld [vmem:[%s3 + $0xc8] sm:$0xff]
  %v1819 = vld [vmem:[%s3 + $0xd0] sm:$0xff]
  %v1820 = vld [vmem:[%s3 + $0xd8] sm:$0xff]
  %v1821 = vld [vmem:[%s3 + $0xe0] sm:$0xff]
  %v1822 = vld [vmem:[%s3 + $0xe8] sm:$0xff]
  %v1823 = vld [vmem:[%s3 + $0xf0] sm:$0xff]
  %v1824 = vld [vmem:[%s3 + $0xf8] sm:$0xff]
  %v1825 = vld [vmem:[%s3 + $0x100] sm:$0xff]
  %v1826 = vld [vmem:[%s3 + $0x108] sm:$0xff]
  %v1827 = vld [vmem:[%s3 + $0x110] sm:$0xff]
  %v1828 = vld [vmem:[%s3 + $0x118] sm:$0xff]
  %v1829 = vld [vmem:[%s3 + $0x120] sm:$0xff]
  %v1830 = vld [vmem:[%s3 + $0x128] sm:$0xff]
  %v1831 = vld [vmem:[%s3 + $0x130] sm:$0xff]
  %v1832 = vld [vmem:[%s3 + $0x138] sm:$0xff]
  %v1833 = vld [vmem:[%s3 + $0x140] sm:$0xff]
  %v1834 = vld [vmem:[%s3 + $0x148] sm:$0xff]
  %v1835 = vld [vmem:[%s3 + $0x150] sm:$0xff]
  %v1836 = vld [vmem:[%s3 + $0x158] sm:$0xff]
  %v1837 = vld [vmem:[%s3 + $0x160] sm:$0xff]
  %v1838 = vld [vmem:[%s3 + $0x168] sm:$0xff]
  %v1839 = vld [vmem:[%s3 + $0x170] sm:$0xff]
  %v1840 = vld [vmem:[%s3 + $0x178] sm:$0xff]
  %v1841 = vld [vmem:[%s3 + $0x180] sm:$0xff]
  %v1842 = vld [vmem:[%s3 + $0x188] sm:$0xff]
  %v1843 = vld [vmem:[%s3 + $0x190] sm:$0xff]
  %v1844 = vld [vmem:[%s3 + $0x198] sm:$0xff]
  %v1845 = vld [vmem:[%s3 + $0x1a0] sm:$0xff]
  %v1846 = vld [vmem:[%s3 + $0x1a8] sm:$0xff]
  %v1847 = vld [vmem:[%s3 + $0x1b0] sm:$0xff]
  %v1848 = vld [vmem:[%s3 + $0x1b8] sm:$0xff]
  %v1849 = vld [vmem:[%s3 + $0x1c0] sm:$0xff]
  %v1850 = vld [vmem:[%s3 + $0x1c8] sm:$0xff]
  %v1851 = vld [vmem:[%s3 + $0x1d0] sm:$0xff]
  %v1852 = vld [vmem:[%s3 + $0x1d8] sm:$0xff]
  %v1853 = vld [vmem:[%s3 + $0x1e0] sm:$0xff]
  %v1854 = vld [vmem:[%s3 + $0x1e8] sm:$0xff]
  %v1855 = vld [vmem:[%s3 + $0x1f0] sm:$0xff]
  %v1856 = vld [vmem:[%s3 + $0x1f8] sm:$0xff]
  %v1857 = vld [vmem:[%s3 + $0x200] sm:$0xff]
  %v1858 = vld [vmem:[%s3 + $0x208] sm:$0xff]
  %v1859 = vld [vmem:[%s3 + $0x210] sm:$0xff]
  %v1860 = vld [vmem:[%s3 + $0x218] sm:$0xff]
  %v1861 = vld [vmem:[%s3 + $0x220] sm:$0xff]
  %v1862 = vld [vmem:[%s3 + $0x228] sm:$0xff]
  %v1863 = vld [vmem:[%s3 + $0x230] sm:$0xff]
  %v1864 = vld [vmem:[%s3 + $0x238] sm:$0xff]
  %v1865 = vld [vmem:[%s3 + $0x240] sm:$0xff]
  %v1866 = vld [vmem:[%s3 + $0x248] sm:$0xff]
  %v1867 = vld [vmem:[%s3 + $0x250] sm:$0xff]
  %v1868 = vld [vmem:[%s3 + $0x258] sm:$0xff]
  %v1869 = vld [vmem:[%s3 + $0x260] sm:$0xff]
  %v1870 = vld [vmem:[%s3 + $0x268] sm:$0xff]
  %v1871 = vld [vmem:[%s3 + $0x270] sm:$0xff]
  %v1872 = vld [vmem:[%s3 + $0x278] sm:$0xff]
  %v1873 = vld [vmem:[%s3 + $0x280] sm:$0xff]
  %v1874 = vld [vmem:[%s3 + $0x288] sm:$0xff]
  %v1875 = vld [vmem:[%s3 + $0x290] sm:$0xff]
  %v1876 = vld [vmem:[%s3 + $0x298] sm:$0xff]
  %v1877 = vld [vmem:[%s3 + $0x2a0] sm:$0xff]
  %v1878 = vld [vmem:[%s3 + $0x2a8] sm:$0xff]
  %v1879 = vld [vmem:[%s3 + $0x2b0] sm:$0xff]
  %v1880 = vld [vmem:[%s3 + $0x2b8] sm:$0xff]
  %v1881 = vld [vmem:[%s3 + $0x2c0] sm:$0xff]
  %v1882 = vld [vmem:[%s3 + $0x2c8] sm:$0xff]
  %v1883 = vld [vmem:[%s3 + $0x2d0] sm:$0xff]
  %v1884 = vld [vmem:[%s3 + $0x2d8] sm:$0xff]
  %v1885 = vld [vmem:[%s3 + $0x2e0] sm:$0xff]
  %v1886 = vld [vmem:[%s3 + $0x2e8] sm:$0xff]
  %v1887 = vld [vmem:[%s3 + $0x2f0] sm:$0xff]
  %v1888 = vld [vmem:[%s3 + $0x2f8] sm:$0xff]
  %v1889 = vld [vmem:[%s3 + $0x300] sm:$0xff]
  %v1890 = vld [vmem:[%s3 + $0x308] sm:$0xff]
  %v1891 = vld [vmem:[%s3 + $0x310] sm:$0xff]
  %v1892 = vld [vmem:[%s3 + $0x318] sm:$0xff]
  %v1893 = vld [vmem:[%s3 + $0x320] sm:$0xff]
  %v1894 = vld [vmem:[%s3 + $0x328] sm:$0xff]
  %v1895 = vld [vmem:[%s3 + $0x330] sm:$0xff]
  %v1896 = vld [vmem:[%s3 + $0x338] sm:$0xff]
  %v1897 = vld [vmem:[%s3 + $0x340] sm:$0xff]
  %v1898 = vld [vmem:[%s3 + $0x348] sm:$0xff]
  %v1899 = vld [vmem:[%s3 + $0x350] sm:$0xff]
  %v1900 = vld [vmem:[%s3 + $0x358] sm:$0xff]
  %v1901 = vld [vmem:[%s3 + $0x360] sm:$0xff]
  %v1902 = vld [vmem:[%s3 + $0x368] sm:$0xff]
  %v1903 = vld [vmem:[%s3 + $0x370] sm:$0xff]
  %v1904 = vld [vmem:[%s3 + $0x378] sm:$0xff]
  %v1905 = vld [vmem:[%s3 + $0x380] sm:$0xff]
  %v1906 = vld [vmem:[%s3 + $0x388] sm:$0xff]
  %v1907 = vld [vmem:[%s3 + $0x390] sm:$0xff]
  %v1908 = vld [vmem:[%s3 + $0x398] sm:$0xff]
  %v1909 = vld [vmem:[%s3 + $0x3a0] sm:$0xff]
  %v1910 = vld [vmem:[%s3 + $0x3a8] sm:$0xff]
  %v1911 = vld [vmem:[%s3 + $0x3b0] sm:$0xff]
  %v1912 = vld [vmem:[%s3 + $0x3b8] sm:$0xff]
  %v1913 = vld [vmem:[%s3 + $0x3c0] sm:$0xff]
  %v1914 = vld [vmem:[%s3 + $0x3c8] sm:$0xff]
  %v1915 = vld [vmem:[%s3 + $0x3d0] sm:$0xff]
  %v1916 = vld [vmem:[%s3 + $0x3d8] sm:$0xff]
  %v1917 = vld [vmem:[%s3 + $0x3e0] sm:$0xff]
  %v1918 = vld [vmem:[%s3 + $0x3e8] sm:$0xff]
  %v1919 = vld [vmem:[%s3 + $0x3f0] sm:$0xff]
  %v1920 = vld [vmem:[%s3 + $0x3f8] sm:$0xff]
  %v1921 = vld [vmem:[%s4] sm:$0xf]
  %v1923 = vlaneseq
  %v1924 = vshrl.u32 %v1923, 7
  %v1925 = vsub.s32 0, %v1924
  %v1926 = vrot.slane %v1921, %v1925
  %v1927 = vlaneseq
  %v1928 = vshrl.u32 %v1927, 7
  %v1929 = vsub.s32 1, %v1928
  %v1930 = vrot.slane %v1921, %v1929
  %v1931 = vlaneseq
  %v1932 = vshrl.u32 %v1931, 7
  %v1933 = vsub.s32 2, %v1932
  %v1934 = vrot.slane %v1921, %v1933
  %v1935 = vlaneseq
  %v1936 = vshrl.u32 %v1935, 7
  %v1937 = vsub.s32 3, %v1936
  %v1938 = vrot.slane %v1921, %v1937
  %v2071 = vunpack.c.l.b16 %v1793
  %v2072 = vunpack.c.h.b16 %v1793
  %v2073 = vunpack.c.l.b16 %v1794
  %v2074 = vunpack.c.h.b16 %v1794
  %v2075 = vunpack.c.l.b16 %v1795
  %v2076 = vunpack.c.h.b16 %v1795
  %v2077 = vunpack.c.l.b16 %v1796
  %v2078 = vunpack.c.h.b16 %v1796
  %v2079 = vunpack.c.l.b16 %v1797
  %v2080 = vunpack.c.h.b16 %v1797
  %v2081 = vunpack.c.l.b16 %v1798
  %v2082 = vunpack.c.h.b16 %v1798
  %v2083 = vunpack.c.l.b16 %v1799
  %v2084 = vunpack.c.h.b16 %v1799
  %v2085 = vunpack.c.l.b16 %v1800
  %v2086 = vunpack.c.h.b16 %v1800
  %v2087 = vunpack.c.l.b16 %v1801
  %v2088 = vunpack.c.h.b16 %v1801
  %v2089 = vunpack.c.l.b16 %v1802
  %v2090 = vunpack.c.h.b16 %v1802
  %v2091 = vunpack.c.l.b16 %v1803
  %v2092 = vunpack.c.h.b16 %v1803
  %v2093 = vunpack.c.l.b16 %v1804
  %v2094 = vunpack.c.h.b16 %v1804
  %v2095 = vunpack.c.l.b16 %v1805
  %v2096 = vunpack.c.h.b16 %v1805
  %v2097 = vunpack.c.l.b16 %v1806
  %v2098 = vunpack.c.h.b16 %v1806
  %v2099 = vunpack.c.l.b16 %v1807
  %v2100 = vunpack.c.h.b16 %v1807
  %v2101 = vunpack.c.l.b16 %v1808
  %v2102 = vunpack.c.h.b16 %v1808
  %v2103 = vunpack.c.l.b16 %v1809
  %v2104 = vunpack.c.h.b16 %v1809
  %v2105 = vunpack.c.l.b16 %v1810
  %v2106 = vunpack.c.h.b16 %v1810
  %v2107 = vunpack.c.l.b16 %v1811
  %v2108 = vunpack.c.h.b16 %v1811
  %v2109 = vunpack.c.l.b16 %v1812
  %v2110 = vunpack.c.h.b16 %v1812
  %v2111 = vunpack.c.l.b16 %v1813
  %v2112 = vunpack.c.h.b16 %v1813
  %v2113 = vunpack.c.l.b16 %v1814
  %v2114 = vunpack.c.h.b16 %v1814
  %v2115 = vunpack.c.l.b16 %v1815
  %v2116 = vunpack.c.h.b16 %v1815
  %v2117 = vunpack.c.l.b16 %v1816
  %v2118 = vunpack.c.h.b16 %v1816
  %v2119 = vunpack.c.l.b16 %v1817
  %v2120 = vunpack.c.h.b16 %v1817
  %v2121 = vunpack.c.l.b16 %v1818
  %v2122 = vunpack.c.h.b16 %v1818
  %v2123 = vunpack.c.l.b16 %v1819
  %v2124 = vunpack.c.h.b16 %v1819
  %v2125 = vunpack.c.l.b16 %v1820
  %v2126 = vunpack.c.h.b16 %v1820
  %v2127 = vunpack.c.l.b16 %v1821
  %v2128 = vunpack.c.h.b16 %v1821
  %v2129 = vunpack.c.l.b16 %v1822
  %v2130 = vunpack.c.h.b16 %v1822
  %v2131 = vunpack.c.l.b16 %v1823
  %v2132 = vunpack.c.h.b16 %v1823
  %v2133 = vunpack.c.l.b16 %v1824
  %v2134 = vunpack.c.h.b16 %v1824
  %v2135 = vunpack.c.l.b16 %v1825
  %v2136 = vunpack.c.h.b16 %v1825
  %v2137 = vunpack.c.l.b16 %v1826
  %v2138 = vunpack.c.h.b16 %v1826
  %v2139 = vunpack.c.l.b16 %v1827
  %v2140 = vunpack.c.h.b16 %v1827
  %v2141 = vunpack.c.l.b16 %v1828
  %v2142 = vunpack.c.h.b16 %v1828
  %v2143 = vunpack.c.l.b16 %v1829
  %v2144 = vunpack.c.h.b16 %v1829
  %v2145 = vunpack.c.l.b16 %v1830
  %v2146 = vunpack.c.h.b16 %v1830
  %v2147 = vunpack.c.l.b16 %v1831
  %v2148 = vunpack.c.h.b16 %v1831
  %v2149 = vunpack.c.l.b16 %v1832
  %v2150 = vunpack.c.h.b16 %v1832
  %v2151 = vunpack.c.l.b16 %v1833
  %v2152 = vunpack.c.h.b16 %v1833
  %v2153 = vunpack.c.l.b16 %v1834
  %v2154 = vunpack.c.h.b16 %v1834
  %v2155 = vunpack.c.l.b16 %v1835
  %v2156 = vunpack.c.h.b16 %v1835
  %v2157 = vunpack.c.l.b16 %v1836
  %v2158 = vunpack.c.h.b16 %v1836
  %v2159 = vunpack.c.l.b16 %v1837
  %v2160 = vunpack.c.h.b16 %v1837
  %v2161 = vunpack.c.l.b16 %v1838
  %v2162 = vunpack.c.h.b16 %v1838
  %v2163 = vunpack.c.l.b16 %v1839
  %v2164 = vunpack.c.h.b16 %v1839
  %v2165 = vunpack.c.l.b16 %v1840
  %v2166 = vunpack.c.h.b16 %v1840
  %v2167 = vunpack.c.l.b16 %v1841
  %v2168 = vunpack.c.h.b16 %v1841
  %v2169 = vunpack.c.l.b16 %v1842
  %v2170 = vunpack.c.h.b16 %v1842
  %v2171 = vunpack.c.l.b16 %v1843
  %v2172 = vunpack.c.h.b16 %v1843
  %v2173 = vunpack.c.l.b16 %v1844
  %v2174 = vunpack.c.h.b16 %v1844
  %v2175 = vunpack.c.l.b16 %v1845
  %v2176 = vunpack.c.h.b16 %v1845
  %v2177 = vunpack.c.l.b16 %v1846
  %v2178 = vunpack.c.h.b16 %v1846
  %v2179 = vunpack.c.l.b16 %v1847
  %v2180 = vunpack.c.h.b16 %v1847
  %v2181 = vunpack.c.l.b16 %v1848
  %v2182 = vunpack.c.h.b16 %v1848
  %v2183 = vunpack.c.l.b16 %v1849
  %v2184 = vunpack.c.h.b16 %v1849
  %v2185 = vunpack.c.l.b16 %v1850
  %v2186 = vunpack.c.h.b16 %v1850
  %v2187 = vunpack.c.l.b16 %v1851
  %v2188 = vunpack.c.h.b16 %v1851
  %v2189 = vunpack.c.l.b16 %v1852
  %v2190 = vunpack.c.h.b16 %v1852
  %v2191 = vunpack.c.l.b16 %v1853
  %v2192 = vunpack.c.h.b16 %v1853
  %v2193 = vunpack.c.l.b16 %v1854
  %v2194 = vunpack.c.h.b16 %v1854
  %v2195 = vunpack.c.l.b16 %v1855
  %v2196 = vunpack.c.h.b16 %v1855
  %v2197 = vunpack.c.l.b16 %v1856
  %v2198 = vunpack.c.h.b16 %v1856
  %v2199 = vunpack.c.l.b16 %v1857
  %v2200 = vunpack.c.h.b16 %v1857
  %v2201 = vunpack.c.l.b16 %v1858
  %v2202 = vunpack.c.h.b16 %v1858
  %v2203 = vunpack.c.l.b16 %v1859
  %v2204 = vunpack.c.h.b16 %v1859
  %v2205 = vunpack.c.l.b16 %v1860
  %v2206 = vunpack.c.h.b16 %v1860
  %v2207 = vunpack.c.l.b16 %v1861
  %v2208 = vunpack.c.h.b16 %v1861
  %v2209 = vunpack.c.l.b16 %v1862
  %v2210 = vunpack.c.h.b16 %v1862
  %v2211 = vunpack.c.l.b16 %v1863
  %v2212 = vunpack.c.h.b16 %v1863
  %v2213 = vunpack.c.l.b16 %v1864
  %v2214 = vunpack.c.h.b16 %v1864
  %v2215 = vunpack.c.l.b16 %v1865
  %v2216 = vunpack.c.h.b16 %v1865
  %v2217 = vunpack.c.l.b16 %v1866
  %v2218 = vunpack.c.h.b16 %v1866
  %v2219 = vunpack.c.l.b16 %v1867
  %v2220 = vunpack.c.h.b16 %v1867
  %v2221 = vunpack.c.l.b16 %v1868
  %v2222 = vunpack.c.h.b16 %v1868
  %v2223 = vunpack.c.l.b16 %v1869
  %v2224 = vunpack.c.h.b16 %v1869
  %v2225 = vunpack.c.l.b16 %v1870
  %v2226 = vunpack.c.h.b16 %v1870
  %v2227 = vunpack.c.l.b16 %v1871
  %v2228 = vunpack.c.h.b16 %v1871
  %v2229 = vunpack.c.l.b16 %v1872
  %v2230 = vunpack.c.h.b16 %v1872
  %v2231 = vunpack.c.l.b16 %v1873
  %v2232 = vunpack.c.h.b16 %v1873
  %v2233 = vunpack.c.l.b16 %v1874
  %v2234 = vunpack.c.h.b16 %v1874
  %v2235 = vunpack.c.l.b16 %v1875
  %v2236 = vunpack.c.h.b16 %v1875
  %v2237 = vunpack.c.l.b16 %v1876
  %v2238 = vunpack.c.h.b16 %v1876
  %v2239 = vunpack.c.l.b16 %v1877
  %v2240 = vunpack.c.h.b16 %v1877
  %v2241 = vunpack.c.l.b16 %v1878
  %v2242 = vunpack.c.h.b16 %v1878
  %v2243 = vunpack.c.l.b16 %v1879
  %v2244 = vunpack.c.h.b16 %v1879
  %v2245 = vunpack.c.l.b16 %v1880
  %v2246 = vunpack.c.h.b16 %v1880
  %v2247 = vunpack.c.l.b16 %v1881
  %v2248 = vunpack.c.h.b16 %v1881
  %v2249 = vunpack.c.l.b16 %v1882
  %v2250 = vunpack.c.h.b16 %v1882
  %v2251 = vunpack.c.l.b16 %v1883
  %v2252 = vunpack.c.h.b16 %v1883
  %v2253 = vunpack.c.l.b16 %v1884
  %v2254 = vunpack.c.h.b16 %v1884
  %v2255 = vunpack.c.l.b16 %v1885
  %v2256 = vunpack.c.h.b16 %v1885
  %v2257 = vunpack.c.l.b16 %v1886
  %v2258 = vunpack.c.h.b16 %v1886
  %v2259 = vunpack.c.l.b16 %v1887
  %v2260 = vunpack.c.h.b16 %v1887
  %v2261 = vunpack.c.l.b16 %v1888
  %v2262 = vunpack.c.h.b16 %v1888
  %v2263 = vunpack.c.l.b16 %v1889
  %v2264 = vunpack.c.h.b16 %v1889
  %v2265 = vunpack.c.l.b16 %v1890
  %v2266 = vunpack.c.h.b16 %v1890
  %v2267 = vunpack.c.l.b16 %v1891
  %v2268 = vunpack.c.h.b16 %v1891
  %v2269 = vunpack.c.l.b16 %v1892
  %v2270 = vunpack.c.h.b16 %v1892
  %v2271 = vunpack.c.l.b16 %v1893
  %v2272 = vunpack.c.h.b16 %v1893
  %v2273 = vunpack.c.l.b16 %v1894
  %v2274 = vunpack.c.h.b16 %v1894
  %v2275 = vunpack.c.l.b16 %v1895
  %v2276 = vunpack.c.h.b16 %v1895
  %v2277 = vunpack.c.l.b16 %v1896
  %v2278 = vunpack.c.h.b16 %v1896
  %v2279 = vunpack.c.l.b16 %v1897
  %v2280 = vunpack.c.h.b16 %v1897
  %v2281 = vunpack.c.l.b16 %v1898
  %v2282 = vunpack.c.h.b16 %v1898
  %v2283 = vunpack.c.l.b16 %v1899
  %v2284 = vunpack.c.h.b16 %v1899
  %v2285 = vunpack.c.l.b16 %v1900
  %v2286 = vunpack.c.h.b16 %v1900
  %v2287 = vunpack.c.l.b16 %v1901
  %v2288 = vunpack.c.h.b16 %v1901
  %v2289 = vunpack.c.l.b16 %v1902
  %v2290 = vunpack.c.h.b16 %v1902
  %v2291 = vunpack.c.l.b16 %v1903
  %v2292 = vunpack.c.h.b16 %v1903
  %v2293 = vunpack.c.l.b16 %v1904
  %v2294 = vunpack.c.h.b16 %v1904
  %v2295 = vunpack.c.l.b16 %v1905
  %v2296 = vunpack.c.h.b16 %v1905
  %v2297 = vunpack.c.l.b16 %v1906
  %v2298 = vunpack.c.h.b16 %v1906
  %v2299 = vunpack.c.l.b16 %v1907
  %v2300 = vunpack.c.h.b16 %v1907
  %v2301 = vunpack.c.l.b16 %v1908
  %v2302 = vunpack.c.h.b16 %v1908
  %v2303 = vunpack.c.l.b16 %v1909
  %v2304 = vunpack.c.h.b16 %v1909
  %v2305 = vunpack.c.l.b16 %v1910
  %v2306 = vunpack.c.h.b16 %v1910
  %v2307 = vunpack.c.l.b16 %v1911
  %v2308 = vunpack.c.h.b16 %v1911
  %v2309 = vunpack.c.l.b16 %v1912
  %v2310 = vunpack.c.h.b16 %v1912
  %v2311 = vunpack.c.l.b16 %v1913
  %v2312 = vunpack.c.h.b16 %v1913
  %v2313 = vunpack.c.l.b16 %v1914
  %v2314 = vunpack.c.h.b16 %v1914
  %v2315 = vunpack.c.l.b16 %v1915
  %v2316 = vunpack.c.h.b16 %v1915
  %v2317 = vunpack.c.l.b16 %v1916
  %v2318 = vunpack.c.h.b16 %v1916
  %v2319 = vunpack.c.l.b16 %v1917
  %v2320 = vunpack.c.h.b16 %v1917
  %v2321 = vunpack.c.l.b16 %v1918
  %v2322 = vunpack.c.h.b16 %v1918
  %v2323 = vunpack.c.l.b16 %v1919
  %v2324 = vunpack.c.h.b16 %v1919
  %v2325 = vunpack.c.l.b16 %v1920
  %v2326 = vunpack.c.h.b16 %v1920
  %v2327 = vpack.c.b16 %v2075, %v2071
  %v2328 = vpack.c.b16 %v2076, %v2072
  %v2329 = vpack.c.b16 %v2077, %v2073
  %v2330 = vpack.c.b16 %v2078, %v2074
  %v2331 = vpack.c.b16 %v2083, %v2079
  %v2332 = vpack.c.b16 %v2084, %v2080
  %v2333 = vpack.c.b16 %v2085, %v2081
  %v2334 = vpack.c.b16 %v2086, %v2082
  %v2335 = vpack.c.b16 %v2091, %v2087
  %v2336 = vpack.c.b16 %v2092, %v2088
  %v2337 = vpack.c.b16 %v2093, %v2089
  %v2338 = vpack.c.b16 %v2094, %v2090
  %v2339 = vpack.c.b16 %v2099, %v2095
  %v2340 = vpack.c.b16 %v2100, %v2096
  %v2341 = vpack.c.b16 %v2101, %v2097
  %v2342 = vpack.c.b16 %v2102, %v2098
  %v2343 = vpack.c.b16 %v2107, %v2103
  %v2344 = vpack.c.b16 %v2108, %v2104
  %v2345 = vpack.c.b16 %v2109, %v2105
  %v2346 = vpack.c.b16 %v2110, %v2106
  %v2347 = vpack.c.b16 %v2115, %v2111
  %v2348 = vpack.c.b16 %v2116, %v2112
  %v2349 = vpack.c.b16 %v2117, %v2113
  %v2350 = vpack.c.b16 %v2118, %v2114
  %v2351 = vpack.c.b16 %v2123, %v2119
  %v2352 = vpack.c.b16 %v2124, %v2120
  %v2353 = vpack.c.b16 %v2125, %v2121
  %v2354 = vpack.c.b16 %v2126, %v2122
  %v2355 = vpack.c.b16 %v2131, %v2127
  %v2356 = vpack.c.b16 %v2132, %v2128
  %v2357 = vpack.c.b16 %v2133, %v2129
  %v2358 = vpack.c.b16 %v2134, %v2130
  %v2359 = vpack.c.b16 %v2139, %v2135
  %v2360 = vpack.c.b16 %v2140, %v2136
  %v2361 = vpack.c.b16 %v2141, %v2137
  %v2362 = vpack.c.b16 %v2142, %v2138
  %v2363 = vpack.c.b16 %v2147, %v2143
  %v2364 = vpack.c.b16 %v2148, %v2144
  %v2365 = vpack.c.b16 %v2149, %v2145
  %v2366 = vpack.c.b16 %v2150, %v2146
  %v2367 = vpack.c.b16 %v2155, %v2151
  %v2368 = vpack.c.b16 %v2156, %v2152
  %v2369 = vpack.c.b16 %v2157, %v2153
  %v2370 = vpack.c.b16 %v2158, %v2154
  %v2371 = vpack.c.b16 %v2163, %v2159
  %v2372 = vpack.c.b16 %v2164, %v2160
  %v2373 = vpack.c.b16 %v2165, %v2161
  %v2374 = vpack.c.b16 %v2166, %v2162
  %v2375 = vpack.c.b16 %v2171, %v2167
  %v2376 = vpack.c.b16 %v2172, %v2168
  %v2377 = vpack.c.b16 %v2173, %v2169
  %v2378 = vpack.c.b16 %v2174, %v2170
  %v2379 = vpack.c.b16 %v2179, %v2175
  %v2380 = vpack.c.b16 %v2180, %v2176
  %v2381 = vpack.c.b16 %v2181, %v2177
  %v2382 = vpack.c.b16 %v2182, %v2178
  %v2383 = vpack.c.b16 %v2187, %v2183
  %v2384 = vpack.c.b16 %v2188, %v2184
  %v2385 = vpack.c.b16 %v2189, %v2185
  %v2386 = vpack.c.b16 %v2190, %v2186
  %v2387 = vpack.c.b16 %v2195, %v2191
  %v2388 = vpack.c.b16 %v2196, %v2192
  %v2389 = vpack.c.b16 %v2197, %v2193
  %v2390 = vpack.c.b16 %v2198, %v2194
  %v2391 = vpack.c.b16 %v2203, %v2199
  %v2392 = vpack.c.b16 %v2204, %v2200
  %v2393 = vpack.c.b16 %v2205, %v2201
  %v2394 = vpack.c.b16 %v2206, %v2202
  %v2395 = vpack.c.b16 %v2211, %v2207
  %v2396 = vpack.c.b16 %v2212, %v2208
  %v2397 = vpack.c.b16 %v2213, %v2209
  %v2398 = vpack.c.b16 %v2214, %v2210
  %v2399 = vpack.c.b16 %v2219, %v2215
  %v2400 = vpack.c.b16 %v2220, %v2216
  %v2401 = vpack.c.b16 %v2221, %v2217
  %v2402 = vpack.c.b16 %v2222, %v2218
  %v2403 = vpack.c.b16 %v2227, %v2223
  %v2404 = vpack.c.b16 %v2228, %v2224
  %v2405 = vpack.c.b16 %v2229, %v2225
  %v2406 = vpack.c.b16 %v2230, %v2226
  %v2407 = vpack.c.b16 %v2235, %v2231
  %v2408 = vpack.c.b16 %v2236, %v2232
  %v2409 = vpack.c.b16 %v2237, %v2233
  %v2410 = vpack.c.b16 %v2238, %v2234
  %v2411 = vpack.c.b16 %v2243, %v2239
  %v2412 = vpack.c.b16 %v2244, %v2240
  %v2413 = vpack.c.b16 %v2245, %v2241
  %v2414 = vpack.c.b16 %v2246, %v2242
  %v2415 = vpack.c.b16 %v2251, %v2247
  %v2416 = vpack.c.b16 %v2252, %v2248
  %v2417 = vpack.c.b16 %v2253, %v2249
  %v2418 = vpack.c.b16 %v2254, %v2250
  %v2419 = vpack.c.b16 %v2259, %v2255
  %v2420 = vpack.c.b16 %v2260, %v2256
  %v2421 = vpack.c.b16 %v2261, %v2257
  %v2422 = vpack.c.b16 %v2262, %v2258
  %v2423 = vpack.c.b16 %v2267, %v2263
  %v2424 = vpack.c.b16 %v2268, %v2264
  %v2425 = vpack.c.b16 %v2269, %v2265
  %v2426 = vpack.c.b16 %v2270, %v2266
  %v2427 = vpack.c.b16 %v2275, %v2271
  %v2428 = vpack.c.b16 %v2276, %v2272
  %v2429 = vpack.c.b16 %v2277, %v2273
  %v2430 = vpack.c.b16 %v2278, %v2274
  %v2431 = vpack.c.b16 %v2283, %v2279
  %v2432 = vpack.c.b16 %v2284, %v2280
  %v2433 = vpack.c.b16 %v2285, %v2281
  %v2434 = vpack.c.b16 %v2286, %v2282
  %v2435 = vpack.c.b16 %v2291, %v2287
  %v2436 = vpack.c.b16 %v2292, %v2288
  %v2437 = vpack.c.b16 %v2293, %v2289
  %v2438 = vpack.c.b16 %v2294, %v2290
  %v2439 = vpack.c.b16 %v2299, %v2295
  %v2440 = vpack.c.b16 %v2300, %v2296
  %v2441 = vpack.c.b16 %v2301, %v2297
  %v2442 = vpack.c.b16 %v2302, %v2298
  %v2443 = vpack.c.b16 %v2307, %v2303
  %v2444 = vpack.c.b16 %v2308, %v2304
  %v2445 = vpack.c.b16 %v2309, %v2305
  %v2446 = vpack.c.b16 %v2310, %v2306
  %v2447 = vpack.c.b16 %v2315, %v2311
  %v2448 = vpack.c.b16 %v2316, %v2312
  %v2449 = vpack.c.b16 %v2317, %v2313
  %v2450 = vpack.c.b16 %v2318, %v2314
  %v2451 = vpack.c.b16 %v2323, %v2319
  %v2452 = vpack.c.b16 %v2324, %v2320
  %v2453 = vpack.c.b16 %v2325, %v2321
  %v2454 = vpack.c.b16 %v2326, %v2322
  %2583 = vmatprep.subr.bf16.mxu0 %v2356
  %2584 = vmatpush1.bf16.msra.mxu0 %v2355
  %2585 = vmatprep.subr.bf16.mxu0 %v2352
  %2586 = vmatpush1.bf16.msra.mxu0 %v2351
  %2587 = vmatprep.subr.bf16.mxu0 %v2348
  %2588 = vmatpush1.bf16.msra.mxu0 %v2347
  %2589 = vmatprep.subr.bf16.mxu0 %v2344
  %2590 = vmatpush1.bf16.msra.mxu0 %v2343
  %2591 = vmatprep.subr.bf16.mxu0 %v2340
  %2592 = vmatpush1.bf16.msra.mxu0 %v2339
  %2593 = vmatprep.subr.bf16.mxu0 %v2336
  %2594 = vmatpush1.bf16.msra.mxu0 %v2335
  %2595 = vmatprep.subr.bf16.mxu0 %v2332
  %2596 = vmatpush1.bf16.msra.mxu0 %v2331
  %2597 = vmatprep.subr.bf16.mxu0 %v2328
  %2598 = vmatpush1.bf16.msra.mxu0 %v2327
  %2599 = vmatprep.subr.bf16.mxu0 %v2388
  %2600 = vmatpush2.bf16.msra.mxu0 %v2387
  %2601 = vmatprep.subr.bf16.mxu0 %v2384
  %2602 = vmatpush2.bf16.msra.mxu0 %v2383
  %2603 = vmatprep.subr.bf16.mxu0 %v2380
  %2604 = vmatpush2.bf16.msra.mxu0 %v2379
  %2605 = vmatprep.subr.bf16.mxu0 %v2376
  %2606 = vmatpush2.bf16.msra.mxu0 %v2375
  %2607 = vmatprep.subr.bf16.mxu0 %v2372
  %2608 = vmatpush2.bf16.msra.mxu0 %v2371
  %2609 = vmatprep.subr.bf16.mxu0 %v2368
  %2610 = vmatpush2.bf16.msra.mxu0 %v2367
  %2611 = vmatprep.subr.bf16.mxu0 %v2364
  %2612 = vmatpush2.bf16.msra.mxu0 %v2363
  %2613 = vmatprep.subr.bf16.mxu0 %v2360
  %2614 = vmatpush2.bf16.msra.mxu0 %v2359
  %2615 = vmatprep.mubr.bf16.mxu0 %v1790
  %2616 = vmatmul.mubr.bf16.gmra.mxu0 %v1789
  %v2617 = vpop.f32.mrf.mxu0
  %v2618 = vadd.f32 %v1926, %v2617
  %v2619 = vpop.f32.mrf.mxu0
  %v2620 = vadd.f32 %v1930, %v2619
  %v2621 = vpop.f32.mrf.mxu0
  %v2622 = vadd.f32 %v1926, %v2621
  %v2623 = vpop.f32.mrf.mxu0
  %v2624 = vadd.f32 %v1930, %v2623
  %2625 = vdwg.mxu0
  %2626 = vmatprep.subr.bf16.mxu0 %v2420
  %2627 = vmatpush1.bf16.msra.mxu0 %v2419
  %2628 = vmatprep.subr.bf16.mxu0 %v2416
  %2629 = vmatpush1.bf16.msra.mxu0 %v2415
  %2630 = vmatprep.subr.bf16.mxu0 %v2412
  %2631 = vmatpush1.bf16.msra.mxu0 %v2411
  %2632 = vmatprep.subr.bf16.mxu0 %v2408
  %2633 = vmatpush1.bf16.msra.mxu0 %v2407
  %2634 = vmatprep.subr.bf16.mxu0 %v2404
  %2635 = vmatpush1.bf16.msra.mxu0 %v2403
  %2636 = vmatprep.subr.bf16.mxu0 %v2400
  %2637 = vmatpush1.bf16.msra.mxu0 %v2399
  %2638 = vmatprep.subr.bf16.mxu0 %v2396
  %2639 = vmatpush1.bf16.msra.mxu0 %v2395
  %2640 = vmatprep.subr.bf16.mxu0 %v2392
  %2641 = vmatpush1.bf16.msra.mxu0 %v2391
  %2642 = vmatprep.subr.bf16.mxu0 %v2452
  %2643 = vmatpush2.bf16.msra.mxu0 %v2451
  %2644 = vmatprep.subr.bf16.mxu0 %v2448
  %2645 = vmatpush2.bf16.msra.mxu0 %v2447
  %2646 = vmatprep.subr.bf16.mxu0 %v2444
  %2647 = vmatpush2.bf16.msra.mxu0 %v2443
  %2648 = vmatprep.subr.bf16.mxu0 %v2440
  %2649 = vmatpush2.bf16.msra.mxu0 %v2439
  %2650 = vmatprep.subr.bf16.mxu0 %v2436
  %2651 = vmatpush2.bf16.msra.mxu0 %v2435
  %2652 = vmatprep.subr.bf16.mxu0 %v2432
  %2653 = vmatpush2.bf16.msra.mxu0 %v2431
  %2654 = vmatprep.subr.bf16.mxu0 %v2428
  %2655 = vmatpush2.bf16.msra.mxu0 %v2427
  %2656 = vmatprep.subr.bf16.mxu0 %v2424
  %2657 = vmatpush2.bf16.msra.mxu0 %v2423
  %2658 = vmatprep.mubr.bf16.mxu0 %v1792
  %2659 = vmatmul.mubr.bf16.gmra.mxu0 %v1791
  %v2660 = vpop.f32.mrf.mxu0
  %v2661 = vadd.f32 %v2618, %v2660
  %v2662 = vpop.f32.mrf.mxu0
  %v2663 = vadd.f32 %v2620, %v2662
  %v2664 = vpop.f32.mrf.mxu0
  %v2665 = vadd.f32 %v2622, %v2664
  %v2666 = vpop.f32.mrf.mxu0
  %v2667 = vadd.f32 %v2624, %v2666
  %2668 = vdwg.mxu0
  %2669 = vmatprep.subr.bf16.mxu0 %v2358
  %2670 = vmatpush1.bf16.msra.mxu0 %v2357
  %2671 = vmatprep.subr.bf16.mxu0 %v2354
  %2672 = vmatpush1.bf16.msra.mxu0 %v2353
  %2673 = vmatprep.subr.bf16.mxu0 %v2350
  %2674 = vmatpush1.bf16.msra.mxu0 %v2349
  %2675 = vmatprep.subr.bf16.mxu0 %v2346
  %2676 = vmatpush1.bf16.msra.mxu0 %v2345
  %2677 = vmatprep.subr.bf16.mxu0 %v2342
  %2678 = vmatpush1.bf16.msra.mxu0 %v2341
  %2679 = vmatprep.subr.bf16.mxu0 %v2338
  %2680 = vmatpush1.bf16.msra.mxu0 %v2337
  %2681 = vmatprep.subr.bf16.mxu0 %v2334
  %2682 = vmatpush1.bf16.msra.mxu0 %v2333
  %2683 = vmatprep.subr.bf16.mxu0 %v2330
  %2684 = vmatpush1.bf16.msra.mxu0 %v2329
  %2685 = vmatprep.subr.bf16.mxu0 %v2390
  %2686 = vmatpush2.bf16.msra.mxu0 %v2389
  %2687 = vmatprep.subr.bf16.mxu0 %v2386
  %2688 = vmatpush2.bf16.msra.mxu0 %v2385
  %2689 = vmatprep.subr.bf16.mxu0 %v2382
  %2690 = vmatpush2.bf16.msra.mxu0 %v2381
  %2691 = vmatprep.subr.bf16.mxu0 %v2378
  %2692 = vmatpush2.bf16.msra.mxu0 %v2377
  %2693 = vmatprep.subr.bf16.mxu0 %v2374
  %2694 = vmatpush2.bf16.msra.mxu0 %v2373
  %2695 = vmatprep.subr.bf16.mxu0 %v2370
  %2696 = vmatpush2.bf16.msra.mxu0 %v2369
  %2697 = vmatprep.subr.bf16.mxu0 %v2366
  %2698 = vmatpush2.bf16.msra.mxu0 %v2365
  %2699 = vmatprep.subr.bf16.mxu0 %v2362
  %2700 = vmatpush2.bf16.msra.mxu0 %v2361
  %2701 = vmatprep.mubr.bf16.mxu0 %v1790
  %2702 = vmatmul.mubr.bf16.gmra.mxu0 %v1789
  %v2703 = vpop.f32.mrf.mxu0
  %v2704 = vadd.f32 %v1934, %v2703
  %v2705 = vpop.f32.mrf.mxu0
  %v2706 = vadd.f32 %v1938, %v2705
  %v2707 = vpop.f32.mrf.mxu0
  %v2708 = vadd.f32 %v1934, %v2707
  %v2709 = vpop.f32.mrf.mxu0
  %v2710 = vadd.f32 %v1938, %v2709
  %2711 = vdwg.mxu0
  %2712 = vmatprep.subr.bf16.mxu0 %v2422
  %2713 = vmatpush1.bf16.msra.mxu0 %v2421
  %2714 = vmatprep.subr.bf16.mxu0 %v2418
  %2715 = vmatpush1.bf16.msra.mxu0 %v2417
  %2716 = vmatprep.subr.bf16.mxu0 %v2414
  %2717 = vmatpush1.bf16.msra.mxu0 %v2413
  %2718 = vmatprep.subr.bf16.mxu0 %v2410
  %2719 = vmatpush1.bf16.msra.mxu0 %v2409
  %2720 = vmatprep.subr.bf16.mxu0 %v2406
  %2721 = vmatpush1.bf16.msra.mxu0 %v2405
  %2722 = vmatprep.subr.bf16.mxu0 %v2402
  %2723 = vmatpush1.bf16.msra.mxu0 %v2401
  %2724 = vmatprep.subr.bf16.mxu0 %v2398
  %2725 = vmatpush1.bf16.msra.mxu0 %v2397
  %2726 = vmatprep.subr.bf16.mxu0 %v2394
  %2727 = vmatpush1.bf16.msra.mxu0 %v2393
  %2728 = vmatprep.subr.bf16.mxu0 %v2454
  %2729 = vmatpush2.bf16.msra.mxu0 %v2453
  %2730 = vmatprep.subr.bf16.mxu0 %v2450
  %2731 = vmatpush2.bf16.msra.mxu0 %v2449
  %2732 = vmatprep.subr.bf16.mxu0 %v2446
  %2733 = vmatpush2.bf16.msra.mxu0 %v2445
  %2734 = vmatprep.subr.bf16.mxu0 %v2442
  %2735 = vmatpush2.bf16.msra.mxu0 %v2441
  %2736 = vmatprep.subr.bf16.mxu0 %v2438
  %2737 = vmatpush2.bf16.msra.mxu0 %v2437
  %2738 = vmatprep.subr.bf16.mxu0 %v2434
  %2739 = vmatpush2.bf16.msra.mxu0 %v2433
  %2740 = vmatprep.subr.bf16.mxu0 %v2430
  %2741 = vmatpush2.bf16.msra.mxu0 %v2429
  %2742 = vmatprep.subr.bf16.mxu0 %v2426
  %2743 = vmatpush2.bf16.msra.mxu0 %v2425
  %2744 = vmatprep.mubr.bf16.mxu0 %v1792
  %2745 = vmatmul.mubr.bf16.gmra.mxu0 %v1791
  %v2746 = vpop.f32.mrf.mxu0
  %v2747 = vadd.f32 %v2704, %v2746
  %v2748 = vpop.f32.mrf.mxu0
  %v2749 = vadd.f32 %v2706, %v2748
  %v2750 = vpop.f32.mrf.mxu0
  %v2751 = vadd.f32 %v2708, %v2750
  %v2752 = vpop.f32.mrf.mxu0
  %v2753 = vadd.f32 %v2710, %v2752
  %2754 = vdwg.mxu0
  %v2755 = vmax.f32 %v2661, 0.0
  %v2756 = vmax.f32 %v2663, 0.0
  %v2757 = vmax.f32 %v2747, 0.0
  %v2758 = vmax.f32 %v2749, 0.0
  %v2759 = vmax.f32 %v2665, 0.0
  %v2760 = vmax.f32 %v2667, 0.0
  %v2761 = vmax.f32 %v2751, 0.0
  %v2762 = vmax.f32 %v2753, 0.0
  %v2763 = vpack.c.bf16 %v2759, %v2755
  %v2764 = vpack.c.bf16 %v2760, %v2756
  %v2765 = vpack.c.bf16 %v2761, %v2757
  %v2766 = vpack.c.bf16 %v2762, %v2758
  %v2767 = vld [vmem:[%s5] sm:$0xf]
  %v2768 = vld [vmem:[%s5 + $0x4] sm:$0xf]
  %v2769 = vld [vmem:[%s5 + $0x8] sm:$0xf]
  %v2770 = vld [vmem:[%s5 + $0xc] sm:$0xf]
  %v2771 = vld [vmem:[%s5 + $0x10] sm:$0xf]
  %v2772 = vld [vmem:[%s5 + $0x14] sm:$0xf]
  %v2773 = vld [vmem:[%s5 + $0x18] sm:$0xf]
  %v2774 = vld [vmem:[%s5 + $0x1c] sm:$0xf]
  %v2775 = vld [vmem:[%s5 + $0x20] sm:$0xf]
  %v2776 = vld [vmem:[%s5 + $0x24] sm:$0xf]
  %v2777 = vld [vmem:[%s5 + $0x28] sm:$0xf]
  %v2778 = vld [vmem:[%s5 + $0x2c] sm:$0xf]
  %v2779 = vld [vmem:[%s5 + $0x30] sm:$0xf]
  %v2780 = vld [vmem:[%s5 + $0x34] sm:$0xf]
  %v2781 = vld [vmem:[%s5 + $0x38] sm:$0xf]
  %v2782 = vld [vmem:[%s5 + $0x3c] sm:$0xf]
  %v2783 = vld [vmem:[%s5 + $0x40] sm:$0xf]
  %v2784 = vld [vmem:[%s5 + $0x44] sm:$0xf]
  %v2785 = vld [vmem:[%s5 + $0x48] sm:$0xf]
  %v2786 = vld [vmem:[%s5 + $0x4c] sm:$0xf]
  %v2787 = vld [vmem:[%s5 + $0x50] sm:$0xf]
  %v2788 = vld [vmem:[%s5 + $0x54] sm:$0xf]
  %v2789 = vld [vmem:[%s5 + $0x58] sm:$0xf]
  %v2790 = vld [vmem:[%s5 + $0x5c] sm:$0xf]
  %v2791 = vld [vmem:[%s5 + $0x60] sm:$0xf]
  %v2792 = vld [vmem:[%s5 + $0x64] sm:$0xf]
  %v2793 = vld [vmem:[%s5 + $0x68] sm:$0xf]
  %v2794 = vld [vmem:[%s5 + $0x6c] sm:$0xf]
  %v2795 = vld [vmem:[%s5 + $0x70] sm:$0xf]
  %v2796 = vld [vmem:[%s5 + $0x74] sm:$0xf]
  %v2797 = vld [vmem:[%s5 + $0x78] sm:$0xf]
  %v2798 = vld [vmem:[%s5 + $0x7c] sm:$0xf]
  %v2799 = vld [vmem:[%s5 + $0x80] sm:$0xf]
  %v2800 = vld [vmem:[%s5 + $0x84] sm:$0xf]
  %v2801 = vld [vmem:[%s5 + $0x88] sm:$0xf]
  %v2802 = vld [vmem:[%s5 + $0x8c] sm:$0xf]
  %v2803 = vld [vmem:[%s5 + $0x90] sm:$0xf]
  %v2804 = vld [vmem:[%s5 + $0x94] sm:$0xf]
  %v2805 = vld [vmem:[%s5 + $0x98] sm:$0xf]
  %v2806 = vld [vmem:[%s5 + $0x9c] sm:$0xf]
  %v2807 = vld [vmem:[%s5 + $0xa0] sm:$0xf]
  %v2808 = vld [vmem:[%s5 + $0xa4] sm:$0xf]
  %v2809 = vld [vmem:[%s5 + $0xa8] sm:$0xf]
  %v2810 = vld [vmem:[%s5 + $0xac] sm:$0xf]
  %v2811 = vld [vmem:[%s5 + $0xb0] sm:$0xf]
  %v2812 = vld [vmem:[%s5 + $0xb4] sm:$0xf]
  %v2813 = vld [vmem:[%s5 + $0xb8] sm:$0xf]
  %v2814 = vld [vmem:[%s5 + $0xbc] sm:$0xf]
  %v2815 = vld [vmem:[%s5 + $0xc0] sm:$0xf]
  %v2816 = vld [vmem:[%s5 + $0xc4] sm:$0xf]
  %v2817 = vld [vmem:[%s5 + $0xc8] sm:$0xf]
  %v2818 = vld [vmem:[%s5 + $0xcc] sm:$0xf]
  %v2819 = vld [vmem:[%s5 + $0xd0] sm:$0xf]
  %v2820 = vld [vmem:[%s5 + $0xd4] sm:$0xf]
  %v2821 = vld [vmem:[%s5 + $0xd8] sm:$0xf]
  %v2822 = vld [vmem:[%s5 + $0xdc] sm:$0xf]
  %v2823 = vld [vmem:[%s5 + $0xe0] sm:$0xf]
  %v2824 = vld [vmem:[%s5 + $0xe4] sm:$0xf]
  %v2825 = vld [vmem:[%s5 + $0xe8] sm:$0xf]
  %v2826 = vld [vmem:[%s5 + $0xec] sm:$0xf]
  %v2827 = vld [vmem:[%s5 + $0xf0] sm:$0xf]
  %v2828 = vld [vmem:[%s5 + $0xf4] sm:$0xf]
  %v2829 = vld [vmem:[%s5 + $0xf8] sm:$0xf]
  %v2830 = vld [vmem:[%s5 + $0xfc] sm:$0xf]
  %v2831 = vld [vmem:[%s6] sm:$0x1]
  %v2833 = vlaneseq
  %v2834 = vshrl.u32 %v2833, 7
  %v2835 = vsub.s32 0, %v2834
  %v2836 = vrot.slane %v2831, %v2835
  %v2902 = vunpack.c.l.b16 %v2767
  %v2903 = vunpack.c.l.b16 %v2768
  %v2904 = vunpack.c.l.b16 %v2769
  %v2905 = vunpack.c.l.b16 %v2770
  %v2906 = vunpack.c.l.b16 %v2771
  %v2907 = vunpack.c.l.b16 %v2772
  %v2908 = vunpack.c.l.b16 %v2773
  %v2909 = vunpack.c.l.b16 %v2774
  %v2910 = vunpack.c.l.b16 %v2775
  %v2911 = vunpack.c.l.b16 %v2776
  %v2912 = vunpack.c.l.b16 %v2777
  %v2913 = vunpack.c.l.b16 %v2778
  %v2914 = vunpack.c.l.b16 %v2779
  %v2915 = vunpack.c.l.b16 %v2780
  %v2916 = vunpack.c.l.b16 %v2781
  %v2917 = vunpack.c.l.b16 %v2782
  %v2918 = vunpack.c.l.b16 %v2783
  %v2919 = vunpack.c.l.b16 %v2784
  %v2920 = vunpack.c.l.b16 %v2785
  %v2921 = vunpack.c.l.b16 %v2786
  %v2922 = vunpack.c.l.b16 %v2787
  %v2923 = vunpack.c.l.b16 %v2788
  %v2924 = vunpack.c.l.b16 %v2789
  %v2925 = vunpack.c.l.b16 %v2790
  %v2926 = vunpack.c.l.b16 %v2791
  %v2927 = vunpack.c.l.b16 %v2792
  %v2928 = vunpack.c.l.b16 %v2793
  %v2929 = vunpack.c.l.b16 %v2794
  %v2930 = vunpack.c.l.b16 %v2795
  %v2931 = vunpack.c.l.b16 %v2796
  %v2932 = vunpack.c.l.b16 %v2797
  %v2933 = vunpack.c.l.b16 %v2798
  %v2934 = vunpack.c.l.b16 %v2799
  %v2935 = vunpack.c.l.b16 %v2800
  %v2936 = vunpack.c.l.b16 %v2801
  %v2937 = vunpack.c.l.b16 %v2802
  %v2938 = vunpack.c.l.b16 %v2803
  %v2939 = vunpack.c.l.b16 %v2804
  %v2940 = vunpack.c.l.b16 %v2805
  %v2941 = vunpack.c.l.b16 %v2806
  %v2942 = vunpack.c.l.b16 %v2807
  %v2943 = vunpack.c.l.b16 %v2808
  %v2944 = vunpack.c.l.b16 %v2809
  %v2945 = vunpack.c.l.b16 %v2810
  %v2946 = vunpack.c.l.b16 %v2811
  %v2947 = vunpack.c.l.b16 %v2812
  %v2948 = vunpack.c.l.b16 %v2813
  %v2949 = vunpack.c.l.b16 %v2814
  %v2950 = vunpack.c.l.b16 %v2815
  %v2951 = vunpack.c.l.b16 %v2816
  %v2952 = vunpack.c.l.b16 %v2817
  %v2953 = vunpack.c.l.b16 %v2818
  %v2954 = vunpack.c.l.b16 %v2819
  %v2955 = vunpack.c.l.b16 %v2820
  %v2956 = vunpack.c.l.b16 %v2821
  %v2957 = vunpack.c.l.b16 %v2822
  %v2958 = vunpack.c.l.b16 %v2823
  %v2959 = vunpack.c.l.b16 %v2824
  %v2960 = vunpack.c.l.b16 %v2825
  %v2961 = vunpack.c.l.b16 %v2826
  %v2962 = vunpack.c.l.b16 %v2827
  %v2963 = vunpack.c.l.b16 %v2828
  %v2964 = vunpack.c.l.b16 %v2829
  %v2965 = vunpack.c.l.b16 %v2830
  %v2966 = vpack.c.b16 %v2903, %v2902
  %v2967 = vpack.c.b16 %v2905, %v2904
  %v2968 = vpack.c.b16 %v2907, %v2906
  %v2969 = vpack.c.b16 %v2909, %v2908
  %v2970 = vpack.c.b16 %v2911, %v2910
  %v2971 = vpack.c.b16 %v2913, %v2912
  %v2972 = vpack.c.b16 %v2915, %v2914
  %v2973 = vpack.c.b16 %v2917, %v2916
  %v2974 = vpack.c.b16 %v2919, %v2918
  %v2975 = vpack.c.b16 %v2921, %v2920
  %v2976 = vpack.c.b16 %v2923, %v2922
  %v2977 = vpack.c.b16 %v2925, %v2924
  %v2978 = vpack.c.b16 %v2927, %v2926
  %v2979 = vpack.c.b16 %v2929, %v2928
  %v2980 = vpack.c.b16 %v2931, %v2930
  %v2981 = vpack.c.b16 %v2933, %v2932
  %v2982 = vpack.c.b16 %v2935, %v2934
  %v2983 = vpack.c.b16 %v2937, %v2936
  %v2984 = vpack.c.b16 %v2939, %v2938
  %v2985 = vpack.c.b16 %v2941, %v2940
  %v2986 = vpack.c.b16 %v2943, %v2942
  %v2987 = vpack.c.b16 %v2945, %v2944
  %v2988 = vpack.c.b16 %v2947, %v2946
  %v2989 = vpack.c.b16 %v2949, %v2948
  %v2990 = vpack.c.b16 %v2951, %v2950
  %v2991 = vpack.c.b16 %v2953, %v2952
  %v2992 = vpack.c.b16 %v2955, %v2954
  %v2993 = vpack.c.b16 %v2957, %v2956
  %v2994 = vpack.c.b16 %v2959, %v2958
  %v2995 = vpack.c.b16 %v2961, %v2960
  %v2996 = vpack.c.b16 %v2963, %v2962
  %v2997 = vpack.c.b16 %v2965, %v2964
  %3030 = vmatprep.subr.bf16.mxu0 0
  %3031 = vmatpush1.bf16.msra.mxu0 %v2973
  %3032 = vmatprep.subr.bf16.mxu0 0
  %3033 = vmatpush1.bf16.msra.mxu0 %v2972
  %3034 = vmatprep.subr.bf16.mxu0 0
  %3035 = vmatpush1.bf16.msra.mxu0 %v2971
  %3036 = vmatprep.subr.bf16.mxu0 0
  %3037 = vmatpush1.bf16.msra.mxu0 %v2970
  %3038 = vmatprep.subr.bf16.mxu0 0
  %3039 = vmatpush1.bf16.msra.mxu0 %v2969
  %3040 = vmatprep.subr.bf16.mxu0 0
  %3041 = vmatpush1.bf16.msra.mxu0 %v2968
  %3042 = vmatprep.subr.bf16.mxu0 0
  %3043 = vmatpush1.bf16.msra.mxu0 %v2967
  %3044 = vmatprep.subr.bf16.mxu0 0
  %3045 = vmatpush1.bf16.msra.mxu0 %v2966
  %3046 = vmatprep.subr.bf16.mxu0 0
  %3047 = vmatpush2.bf16.msra.mxu0 %v2981
  %3048 = vmatprep.subr.bf16.mxu0 0
  %3049 = vmatpush2.bf16.msra.mxu0 %v2980
  %3050 = vmatprep.subr.bf16.mxu0 0
  %3051 = vmatpush2.bf16.msra.mxu0 %v2979
  %3052 = vmatprep.subr.bf16.mxu0 0
  %3053 = vmatpush2.bf16.msra.mxu0 %v2978
  %3054 = vmatprep.subr.bf16.mxu0 0
  %3055 = vmatpush2.bf16.msra.mxu0 %v2977
  %3056 = vmatprep.subr.bf16.mxu0 0
  %3057 = vmatpush2.bf16.msra.mxu0 %v2976
  %3058 = vmatprep.subr.bf16.mxu0 0
  %3059 = vmatpush2.bf16.msra.mxu0 %v2975
  %3060 = vmatprep.subr.bf16.mxu0 0
  %3061 = vmatpush2.bf16.msra.mxu0 %v2974
  %3062 = vmatprep.mubr.bf16.mxu0 %v2764
  %3063 = vmatmul.mubr.bf16.gmra.mxu0 %v2763
  %v3064 = vpop.f32.mrf.mxu0
  %v3065 = vadd.f32 %v2836, %v3064
  %v3066 = vpop.f32.mrf.mxu0
  %v3067 = vpop.f32.mrf.mxu0
  %v3068 = vadd.f32 %v2836, %v3067
  %v3069 = vpop.f32.mrf.mxu0
  %3070 = vdwg.mxu0
  %3071 = vmatprep.subr.bf16.mxu0 0
  %3072 = vmatpush1.bf16.msra.mxu0 %v2989
  %3073 = vmatprep.subr.bf16.mxu0 0
  %3074 = vmatpush1.bf16.msra.mxu0 %v2988
  %3075 = vmatprep.subr.bf16.mxu0 0
  %3076 = vmatpush1.bf16.msra.mxu0 %v2987
  %3077 = vmatprep.subr.bf16.mxu0 0
  %3078 = vmatpush1.bf16.msra.mxu0 %v2986
  %3079 = vmatprep.subr.bf16.mxu0 0
  %3080 = vmatpush1.bf16.msra.mxu0 %v2985
  %3081 = vmatprep.subr.bf16.mxu0 0
  %3082 = vmatpush1.bf16.msra.mxu0 %v2984
  %3083 = vmatprep.subr.bf16.mxu0 0
  %3084 = vmatpush1.bf16.msra.mxu0 %v2983
  %3085 = vmatprep.subr.bf16.mxu0 0
  %3086 = vmatpush1.bf16.msra.mxu0 %v2982
  %3087 = vmatprep.subr.bf16.mxu0 0
  %3088 = vmatpush2.bf16.msra.mxu0 %v2997
  %3089 = vmatprep.subr.bf16.mxu0 0
  %3090 = vmatpush2.bf16.msra.mxu0 %v2996
  %3091 = vmatprep.subr.bf16.mxu0 0
  %3092 = vmatpush2.bf16.msra.mxu0 %v2995
  %3093 = vmatprep.subr.bf16.mxu0 0
  %3094 = vmatpush2.bf16.msra.mxu0 %v2994
  %3095 = vmatprep.subr.bf16.mxu0 0
  %3096 = vmatpush2.bf16.msra.mxu0 %v2993
  %3097 = vmatprep.subr.bf16.mxu0 0
  %3098 = vmatpush2.bf16.msra.mxu0 %v2992
  %3099 = vmatprep.subr.bf16.mxu0 0
  %3100 = vmatpush2.bf16.msra.mxu0 %v2991
  %3101 = vmatprep.subr.bf16.mxu0 0
  %3102 = vmatpush2.bf16.msra.mxu0 %v2990
  %3103 = vmatprep.mubr.bf16.mxu0 %v2766
  %3104 = vmatmul.mubr.bf16.gmra.mxu0 %v2765
  %v3105 = vpop.f32.mrf.mxu0
  %v3106 = vadd.f32 %v3065, %v3105
  %v3107 = vpop.f32.mrf.mxu0
  %v3108 = vpop.f32.mrf.mxu0
  %v3109 = vadd.f32 %v3068, %v3108
  %v3110 = vpop.f32.mrf.mxu0
  %3111 = vdwg.mxu0
  %3112 = vmax.xlane.f32.xlu0 %v3106
  %v3113 = vpop.xlane.xlu0 %3112
  %3114 = vmax.xlane.f32.xlu0 %v3109
  %v3115 = vpop.xlane.xlu0 %3114
  %v3116 = vsub.f32 %v3106, %v3113
  %v3117 = vsub.f32 %v3109, %v3115
  %v3118 = vmul.f32 %v3116, 1.442695
  %v3119 = vpow.pop %v3118
  %v3120 = vmul.f32 %v3117, 1.442695
  %v3121 = vpow.pop %v3120
  %3122 = vadd.xlane.f32.xlu0 %v3119
  %v3123 = vpop.xlane.xlu0 %3122
  %3124 = vadd.xlane.f32.xlu0 %v3121
  %v3125 = vpop.xlane.xlu0 %3124
  %v3126 = vlog2.pop %v3123
  %v3127 = vmul.f32 %v3126, 0.6931472
  %v3128 = vlog2.pop %v3125
  %v3129 = vmul.f32 %v3128, 0.6931472
  %v3130 = vadd.f32 %v3127, %v3113
  %v3131 = vadd.f32 %v3129, %v3115
  %v3132 = vsub.f32 %v3106, %v3130
  %v3133 = vsub.f32 %v3109, %v3131
  %3134 = vst [vmem:[%s7] sm:$0xff] %v3132
  %3135 = vst [vmem:[%s7 + $0x8] sm:$0xff] %v3133
  // Predicated region
  $region30: #{bayesian_network_forward.1} parent=0 // pred_check
    _
  $region31: #{bayesian_network_forward.1} parent=0 // pred_check_branch
    %3137 = sbr.rel (0) target = $region33
  $region32: #{bayesian_network_forward.1} parent=0 // pred_region
    _
  $region33: #{bayesian_network_forward.1} parent=0 // pred_fallthru
    _
  // Predicated region
  $region34: #{bayesian_network_forward.1} parent=0 // pred_check
    _
  $region35: #{bayesian_network_forward.1} parent=0 // pred_check_branch
    %3139 = sbr.rel (0) target = $region37
  $region36: #{bayesian_network_forward.1} parent=0 // pred_region
    _
  $region37: #{bayesian_network_forward.1} parent=0 // pred_fallthru
    _

</llo_original>
